<compile_context>
chip_gen: v7x
topology: tpu7x:2x2x1
jax: 0.10.0
libtpu: 0.0.40
codegen_flags: <defaults>
</compile_context>

<pallas_src>
import math
import functools

import jax
import jax.numpy as jnp
from jax.experimental import pallas as pl
from jax.experimental.pallas import tpu as pltpu

# dtype fed to the MXU (accumulation is always f32)
MXU_DTYPE = jnp.bfloat16


def _round_up(x, m):
    return ((x + m - 1) // m) * m


def _pad2d(x, rows, cols):
    pr, pc = rows - x.shape[0], cols - x.shape[1]
    if pr == 0 and pc == 0:
        return x
    return jnp.pad(x, ((0, pr), (0, pc)))


# ------------------------- tiled linear (matmul) ---------------------------

def _linear_kernel(x_ref, w_ref, b_ref, o_ref, acc_ref, *, relu):
    @pl.when(pl.program_id(2) == 0)
    def _():
        acc_ref[...] = jnp.zeros_like(acc_ref)

    acc_ref[...] += jnp.dot(
        x_ref[...].astype(MXU_DTYPE), w_ref[...].astype(MXU_DTYPE),
        preferred_element_type=jnp.float32)

    @pl.when(pl.program_id(2) == pl.num_programs(2) - 1)
    def _():
        y = acc_ref[...] + b_ref[...]
        if relu:
            y = jnp.maximum(y, 0.0)
        o_ref[...] = y


def linear(x2d, w, b, relu=False, tm=256, tn=512, tk=512):
    """y = x2d @ w + b (optionally relu).  x2d: [M,K], w: [K,N], b: [N]."""
    M, K = x2d.shape
    N = w.shape[1]
    # Tile sizes sized for v7x's 64 MiB VMEM: 2 inputs x 2 buffers x tile + acc
    # stays well under the 32 MiB default scoped limit.  Shrink to the problem
    # when it is small; pad (zeros) so tiles divide the padded dims exactly.
    tm = min(tm, _round_up(M, 8))
    tn = min(tn, _round_up(N, 128))
    tk = min(tk, _round_up(K, 128))
    Mp, Kp, Np = _round_up(M, tm), _round_up(K, tk), _round_up(N, tn)

    xp = _pad2d(x2d, Mp, Kp)
    wp = _pad2d(w, Kp, Np)
    bp = _pad2d(b.reshape(1, N), 1, Np)

    out = pl.pallas_call(
        functools.partial(_linear_kernel, relu=relu),
        out_shape=jax.ShapeDtypeStruct((Mp, Np), jnp.float32),
        grid=(Mp // tm, Np // tn, Kp // tk),
        in_specs=[
            pl.BlockSpec((tm, tk), lambda i, j, k: (i, k)),
            pl.BlockSpec((tk, tn), lambda i, j, k: (k, j)),
            pl.BlockSpec((1, tn), lambda i, j, k: (0, j)),
        ],
        out_specs=pl.BlockSpec((tm, tn), lambda i, j, k: (i, j)),
        scratch_shapes=[pltpu.VMEM((tm, tn), jnp.float32)],
        compiler_params=pltpu.CompilerParams(
            dimension_semantics=("parallel", "parallel", "arbitrary")),
    )(xp, wp, bp)
    if Mp != M or Np != N:
        out = out[:M, :N]
    return out


# -------------------- fused residual-add + layernorm -----------------------

def _layernorm_kernel(*refs, eps, has_residual):
    if has_residual:
        x_ref, r_ref, g_ref, b_ref, o_ref = refs
        x = x_ref[...] + r_ref[...]
    else:
        x_ref, g_ref, b_ref, o_ref = refs
        x = x_ref[...]
    mu = jnp.mean(x, axis=-1, keepdims=True)
    var = jnp.mean((x - mu) ** 2, axis=-1, keepdims=True)
    o_ref[...] = (x - mu) * jax.lax.rsqrt(var + eps) * g_ref[...] + b_ref[...]


def add_layer_norm(x, residual, g, b, eps=1e-5, tm=512):
    """LayerNorm(x + residual) over the last dim (residual may be None)."""
    B, S, D = x.shape
    M = B * S
    tm = min(tm, _round_up(M, 8))
    Mp = _round_up(M, tm)

    row_args = [x.reshape(M, D)]
    if residual is not None:
        row_args.append(residual.reshape(M, D))
    row_args = [_pad2d(a, Mp, D) for a in row_args]

    row_spec = pl.BlockSpec((tm, D), lambda i: (i, 0))
    vec_spec = pl.BlockSpec((1, D), lambda i: (0, 0))

    y = pl.pallas_call(
        functools.partial(_layernorm_kernel, eps=eps,
                          has_residual=residual is not None),
        out_shape=jax.ShapeDtypeStruct((Mp, D), jnp.float32),
        grid=(Mp // tm,),
        in_specs=[row_spec] * len(row_args) + [vec_spec, vec_spec],
        out_specs=row_spec,
        compiler_params=pltpu.CompilerParams(dimension_semantics=("parallel",)),
    )(*row_args, g.reshape(1, D), b.reshape(1, D))
    return y[:M].reshape(B, S, D)


# ------------------------------ attention ----------------------------------

def _attn_kernel(q_ref, k_ref, v_ref, m_ref, o_ref, *, num_heads, scale):
    q = q_ref[0]                        # [Sq, D]
    k = k_ref[0]                        # [Sk, D]
    v = v_ref[0]                        # [Sk, D]
    keep = m_ref[0] != 0.0              # [Sq, Sk], shared by every head
    dk = q.shape[-1] // num_heads

    parts = []
    for h in range(num_heads):          # heads folded into one grid step
        lo, hi = h * dk, (h + 1) * dk
        qh = q[:, lo:hi].astype(MXU_DTYPE)
        kh = k[:, lo:hi].astype(MXU_DTYPE)
        vh = v[:, lo:hi].astype(MXU_DTYPE)
        s = jax.lax.dot_general(qh, kh, (((1,), (1,)), ((), ())),
                                preferred_element_type=jnp.float32) * scale
        s = jnp.where(keep, s, -1e9)    # masked_fill(mask == 0, -1e9)
        s = s - jnp.max(s, axis=-1, keepdims=True)
        e = jnp.exp(s)
        p = e * pl.reciprocal(jnp.sum(e, axis=-1, keepdims=True), approx=True)
        parts.append(jnp.dot(p.astype(MXU_DTYPE), vh,
                             preferred_element_type=jnp.float32))
    # single lane-dense store of the merged-head context [Sq, D]
    o_ref[0] = jnp.concatenate(parts, axis=-1)


def attention_core(q, k, v, mask_bqk, num_heads):
    """q: [B,Sq,D], k/v: [B,Sk,D], mask_bqk: [B,Sq,Sk] float -> [B,Sq,D]."""
    B, Sq, D = q.shape
    Sk = k.shape[1]
    dk = D // num_heads
    return pl.pallas_call(
        functools.partial(_attn_kernel, num_heads=num_heads,
                          scale=1.0 / math.sqrt(dk)),
        out_shape=jax.ShapeDtypeStruct((B, Sq, D), jnp.float32),
        grid=(B,),
        in_specs=[
            pl.BlockSpec((1, Sq, D), lambda b: (b, 0, 0)),
            pl.BlockSpec((1, Sk, D), lambda b: (b, 0, 0)),
            pl.BlockSpec((1, Sk, D), lambda b: (b, 0, 0)),
            pl.BlockSpec((1, Sq, Sk), lambda b: (b, 0, 0)),
        ],
        out_specs=pl.BlockSpec((1, Sq, D), lambda b: (b, 0, 0)),
        compiler_params=pltpu.CompilerParams(dimension_semantics=("parallel",)),
    )(q, k, v, mask_bqk)


# ------------------------------ model pieces ------------------------------

def _attn_mask(mask, B, Sq, Sk):
    """[B,1,1|Sq,Sk] bool -> [B,Sq,Sk] float32 (no per-head broadcast)."""
    if mask is None:
        return jnp.ones((B, Sq, Sk), jnp.float32)
    return jnp.broadcast_to(mask.astype(jnp.float32)[:, 0], (B, Sq, Sk))


def mha_self(p, x, mask_bqk, num_heads):
    B, S, D = x.shape
    qkv = linear(x.reshape(-1, D), p["w_qkv"], p["b_qkv"]).reshape(B, S, 3 * D)
    q, k, v = qkv[..., :D], qkv[..., D:2 * D], qkv[..., 2 * D:]
    ctx = attention_core(q, k, v, mask_bqk, num_heads)
    return linear(ctx.reshape(-1, D), p["w_o"], p["b_o"]).reshape(B, S, D)


def mha_cross(p, x, enc, mask_bqk, num_heads):
    B, Sq, D = x.shape
    Sk = enc.shape[1]
    q = linear(x.reshape(-1, D), p["w_q"], p["b_q"]).reshape(B, Sq, D)
    kv = linear(enc.reshape(-1, D), p["w_kv"], p["b_kv"]).reshape(B, Sk, 2 * D)
    k, v = kv[..., :D], kv[..., D:]
    ctx = attention_core(q, k, v, mask_bqk, num_heads)
    return linear(ctx.reshape(-1, D), p["w_o"], p["b_o"]).reshape(B, Sq, D)


def ffn_forward(p, x):
    B, S, D = x.shape
    h = linear(x.reshape(-1, D), p["w1"], p["b1"], relu=True)
    o = linear(h, p["w2"], p["b2"])
    return o.reshape(B, S, D)


def encoder_layer(p, x, mask_bqk, num_heads):
    a = mha_self(p["self_attn"], x, mask_bqk, num_heads)
    x = add_layer_norm(a, x, p["n1_g"], p["n1_b"])      # fused residual + LN
    f = ffn_forward(p["ffn"], x)
    x = add_layer_norm(f, x, p["n2_g"], p["n2_b"])
    return x


def decoder_layer(p, x, enc_out, cross_mask, self_mask, num_heads):
    a = mha_self(p["self_attn"], x, self_mask, num_heads)
    x = add_layer_norm(a, x, p["n1_g"], p["n1_b"])
    a = mha_cross(p["cross_attn"], x, enc_out, cross_mask, num_heads)
    x = add_layer_norm(a, x, p["n2_g"], p["n2_b"])
    f = ffn_forward(p["ffn"], x)
    x = add_layer_norm(f, x, p["n3_g"], p["n3_b"])
    return x


def positional_encoding(max_len, d_model):
    pos = jnp.arange(max_len, dtype=jnp.float32)[:, None]
    div = jnp.exp(jnp.arange(0, d_model, 2, dtype=jnp.float32)
                  * (-math.log(10000.0) / d_model))
    pe = jnp.zeros((max_len, d_model), jnp.float32)
    pe = pe.at[:, 0::2].set(jnp.sin(pos * div))
    pe = pe.at[:, 1::2].set(jnp.cos(pos * div))
    return pe


def encoder_forward(p, src, src_mask, cfg):
    D = cfg["d_model"]
    B, Ss = src.shape
    # TODO(synk): embedding lookup is a gather done with jnp.take outside kernels.
    x = jnp.take(p["emb"], src, axis=0) * math.sqrt(D)
    x = x + p["pe"][None, :Ss, :]
    mask_bqk = _attn_mask(src_mask, B, Ss, Ss)
    for lp in p["layers"]:
        x = encoder_layer(lp, x, mask_bqk, cfg["num_heads"])
    return add_layer_norm(x, None, p["norm_g"], p["norm_b"])


def decoder_forward(p, tgt, enc_out, src_mask, tgt_mask, cfg):
    D = cfg["d_model"]
    B, St = tgt.shape
    Ss = enc_out.shape[1]
    x = jnp.take(p["emb"], tgt, axis=0) * math.sqrt(D)
    x = x + p["pe"][None, :St, :]
    self_mask = _attn_mask(tgt_mask, B, St, St)
    cross_mask = _attn_mask(src_mask, B, St, Ss)
    for lp in p["layers"]:
        x = decoder_layer(lp, x, enc_out, cross_mask, self_mask, cfg["num_heads"])
    return add_layer_norm(x, None, p["norm_g"], p["norm_b"])


def transformer_forward(params, src, tgt, src_mask, tgt_mask, cfg):
    enc = encoder_forward(params["encoder"], src, src_mask, cfg)
    dec = decoder_forward(params["decoder"], tgt, enc, src_mask, tgt_mask, cfg)
    B, St, D = dec.shape
    out = linear(dec.reshape(-1, D), params["out_w"], params["out_b"])
    return out.reshape(B, St, cfg["tgt_vocab"])


def create_masks(src, tgt):
    src_mask = (src != 0)[:, None, None, :]                       # [B,1,1,Ss]
    tgt_mask = (tgt != 0)[:, None, None, :]                       # [B,1,1,St]
    St = tgt.shape[1]
    sub = (jnp.triu(jnp.ones((St, St), jnp.float32), k=1) == 0)   # [St,St]
    tgt_mask = tgt_mask & sub[None, None, :, :]                   # [B,1,St,St]
    return src_mask, tgt_mask


# ------------------------------ param init --------------------------------

def _init_linear(key, din, dout, scale=0.05):
    k1, k2 = jax.random.split(key)
    return (jax.random.normal(k1, (din, dout), jnp.float32) * scale,
            jax.random.normal(k2, (dout,), jnp.float32) * scale)


def _init_self_mha(key, d_model):
    ks = jax.random.split(key, 2)
    w_qkv, b_qkv = _init_linear(ks[0], d_model, 3 * d_model)
    w_o, b_o = _init_linear(ks[1], d_model, d_model)
    return dict(w_qkv=w_qkv, b_qkv=b_qkv, w_o=w_o, b_o=b_o)


def _init_cross_mha(key, d_model):
    ks = jax.random.split(key, 3)
    w_q, b_q = _init_linear(ks[0], d_model, d_model)
    w_kv, b_kv = _init_linear(ks[1], d_model, 2 * d_model)
    w_o, b_o = _init_linear(ks[2], d_model, d_model)
    return dict(w_q=w_q, b_q=b_q, w_kv=w_kv, b_kv=b_kv, w_o=w_o, b_o=b_o)


def _init_ffn(key, d_model, d_ff):
    k1, k2 = jax.random.split(key)
    w1, b1 = _init_linear(k1, d_model, d_ff)
    w2, b2 = _init_linear(k2, d_ff, d_model)
    return dict(w1=w1, b1=b1, w2=w2, b2=b2)


def _ln_params(d_model):
    return jnp.ones((d_model,), jnp.float32), jnp.zeros((d_model,), jnp.float32)


def _init_encoder_layer(key, d_model, d_ff):
    k1, k2 = jax.random.split(key)
    n1g, n1b = _ln_params(d_model)
    n2g, n2b = _ln_params(d_model)
    return dict(self_attn=_init_self_mha(k1, d_model),
                ffn=_init_ffn(k2, d_model, d_ff),
                n1_g=n1g, n1_b=n1b, n2_g=n2g, n2_b=n2b)


def _init_decoder_layer(key, d_model, d_ff):
    k1, k2, k3 = jax.random.split(key, 3)
    n1g, n1b = _ln_params(d_model)
    n2g, n2b = _ln_params(d_model)
    n3g, n3b = _ln_params(d_model)
    return dict(self_attn=_init_self_mha(k1, d_model),
                cross_attn=_init_cross_mha(k2, d_model),
                ffn=_init_ffn(k3, d_model, d_ff),
                n1_g=n1g, n1_b=n1b, n2_g=n2g, n2_b=n2b, n3_g=n3g, n3_b=n3b)


def init_transformer(key, cfg):
    d_model, d_ff = cfg["d_model"], cfg["d_ff"]
    pe = positional_encoding(cfg["max_seq"], d_model)
    keys = jax.random.split(key, 5)

    enc_layer_keys = jax.random.split(keys[0], cfg["num_layers"])
    dec_layer_keys = jax.random.split(keys[1], cfg["num_layers"])
    eng, enb = _ln_params(d_model)
    dng, dnb = _ln_params(d_model)

    encoder = dict(
        emb=jax.random.normal(keys[2], (cfg["src_vocab"], d_model), jnp.float32) * 0.1,
        pe=pe,
        layers=[_init_encoder_layer(k, d_model, d_ff) for k in enc_layer_keys],
        norm_g=eng, norm_b=enb)
    decoder = dict(
        emb=jax.random.normal(keys[3], (cfg["tgt_vocab"], d_model), jnp.float32) * 0.1,
        pe=pe,
        layers=[_init_decoder_layer(k, d_model, d_ff) for k in dec_layer_keys],
        norm_g=dng, norm_b=dnb)
    out_w, out_b = _init_linear(keys[4], d_model, cfg["tgt_vocab"])
    return dict(encoder=encoder, decoder=decoder, out_w=out_w, out_b=out_b)


# --------------------------------- main ------------------------------------

if __name__ == "__main__":
    cfg = dict(src_vocab=50, tgt_vocab=60, d_model=32, num_layers=2,
               num_heads=4, d_ff=64, max_seq=64)

    key = jax.random.PRNGKey(0)
    k_param, k_src, k_tgt = jax.random.split(key, 3)
    params = init_transformer(k_param, cfg)

    B, S_src, S_tgt = 2, 8, 8
    src = jax.random.randint(k_src, (B, S_src), 1, cfg["src_vocab"], dtype=jnp.int32)
    tgt = jax.random.randint(k_tgt, (B, S_tgt), 1, cfg["tgt_vocab"], dtype=jnp.int32)
    # add some padding tokens (id 0) to exercise the mask path
    src = src.at[:, -2:].set(0)
    tgt = tgt.at[:, -1:].set(0)

    src_mask, tgt_mask = create_masks(src, tgt)

    @jax.jit
    def fwd(params, src, tgt, src_mask, tgt_mask):
        return transformer_forward(params, src, tgt, src_mask, tgt_mask, cfg)

    out = fwd(params, src, tgt, src_mask, tgt_mask)
    out = jax.block_until_ready(out)

    assert out.shape == (B, S_tgt, cfg["tgt_vocab"]), out.shape
    assert bool(jnp.all(jnp.isfinite(out)))
    print("KERNEL_OK")
</pallas_src>

<mosaic_0001>
module attributes {stable_mosaic.version = 11 : i64} {
  func.func @_layernorm_kernel(%arg0: i32, %arg1: memref<16x32xf32, #tpu.memory_space<vmem>>, %arg2: memref<16x32xf32, #tpu.memory_space<vmem>>, %arg3: memref<1x32xf32, #tpu.memory_space<vmem>>, %arg4: memref<1x32xf32, #tpu.memory_space<vmem>>, %arg5: memref<16x32xf32, #tpu.memory_space<vmem>>) attributes {dimension_semantics = [#tpu.dimension_semantics<parallel>], iteration_bounds = array<i64: 1>, scalar_prefetch = 0 : i64, scratch_operands = 0 : i64, tpu.core_type = #tpu.core_type<tc>, window_params = [{transform_indices = @transform_0, window_bounds = array<i64: 16, 32>}, {transform_indices = @transform_1, window_bounds = array<i64: 16, 32>}, {pipeline_mode = #tpu.pipeline_mode<synchronous>, transform_indices = @transform_2, window_bounds = array<i64: 1, 32>}, {pipeline_mode = #tpu.pipeline_mode<synchronous>, transform_indices = @transform_3, window_bounds = array<i64: 1, 32>}, {transform_indices = @transform_4, window_bounds = array<i64: 16, 32>}]} {
    %c0 = arith.constant 0 : index
    %c0_0 = arith.constant 0 : index
    %0 = vector.load %arg1[%c0, %c0_0] : memref<16x32xf32, #tpu.memory_space<vmem>>, vector<16x32xf32>
    %c0_1 = arith.constant 0 : index
    %c0_2 = arith.constant 0 : index
    %1 = vector.load %arg2[%c0_1, %c0_2] : memref<16x32xf32, #tpu.memory_space<vmem>>, vector<16x32xf32>
    %2 = arith.addf %0, %1 : vector<16x32xf32>
    %cst = arith.constant dense<0.000000e+00> : vector<16xf32>
    %3 = vector.multi_reduction <add>, %2, %cst [1] : vector<16x32xf32> to vector<16xf32>
    %4 = vector.shape_cast %3 : vector<16xf32> to vector<16x1xf32>
    %cst_3 = arith.constant 3.200000e+01 : f32
    %5 = vector.broadcast %cst_3 : f32 to vector<16x1xf32>
    %6 = arith.divf %4, %5 : vector<16x1xf32>
    %7 = vector.broadcast %6 : vector<16x1xf32> to vector<16x32xf32>
    %8 = arith.subf %2, %7 : vector<16x32xf32>
    %9 = arith.mulf %8, %8 : vector<16x32xf32>
    %cst_4 = arith.constant dense<0.000000e+00> : vector<16xf32>
    %10 = vector.multi_reduction <add>, %9, %cst_4 [1] : vector<16x32xf32> to vector<16xf32>
    %11 = vector.shape_cast %10 : vector<16xf32> to vector<16x1xf32>
    %cst_5 = arith.constant 3.200000e+01 : f32
    %12 = vector.broadcast %cst_5 : f32 to vector<16x1xf32>
    %13 = arith.divf %11, %12 : vector<16x1xf32>
    %14 = vector.broadcast %6 : vector<16x1xf32> to vector<16x32xf32>
    %15 = arith.subf %2, %14 : vector<16x32xf32>
    %cst_6 = arith.constant 9.99999974E-6 : f32
    %16 = vector.broadcast %cst_6 : f32 to vector<16x1xf32>
    %17 = arith.addf %13, %16 : vector<16x1xf32>
    %18 = math.rsqrt %17 : vector<16x1xf32>
    %19 = vector.broadcast %18 : vector<16x1xf32> to vector<16x32xf32>
    %20 = arith.mulf %15, %19 : vector<16x32xf32>
    %c0_7 = arith.constant 0 : index
    %c0_8 = arith.constant 0 : index
    %21 = vector.load %arg3[%c0_7, %c0_8] : memref<1x32xf32, #tpu.memory_space<vmem>>, vector<1x32xf32>
    %22 = vector.broadcast %21 : vector<1x32xf32> to vector<16x32xf32>
    %23 = arith.mulf %20, %22 : vector<16x32xf32>
    %c0_9 = arith.constant 0 : index
    %c0_10 = arith.constant 0 : index
    %24 = vector.load %arg4[%c0_9, %c0_10] : memref<1x32xf32, #tpu.memory_space<vmem>>, vector<1x32xf32>
    %25 = vector.broadcast %24 : vector<1x32xf32> to vector<16x32xf32>
    %26 = arith.addf %23, %25 : vector<16x32xf32>
    %c0_11 = arith.constant 0 : index
    %c0_12 = arith.constant 0 : index
    %27 = vector.load %arg5[%c0_11, %c0_12] : memref<16x32xf32, #tpu.memory_space<vmem>>, vector<16x32xf32>
    tpu.vector_store %arg5[%c0_11, %c0_12], %26 {strides = array<i32>} : memref<16x32xf32, #tpu.memory_space<vmem>>, vector<16x32xf32>,
    return
  }
  func.func @transform_0(%arg0: i32) -> (i32, i32) {
    %c0_i32 = arith.constant 0 : i32
    %c0_i32_0 = arith.constant 0 : i32
    return %arg0, %c0_i32 : i32, i32
  }
  func.func @transform_1(%arg0: i32) -> (i32, i32) {
    %c0_i32 = arith.constant 0 : i32
    %c0_i32_0 = arith.constant 0 : i32
    return %arg0, %c0_i32 : i32, i32
  }
  func.func @transform_2(%arg0: i32) -> (i32, i32) {
    %c0_i32 = arith.constant 0 : i32
    %c0_i32_0 = arith.constant 0 : i32
    %c0_i32_1 = arith.constant 0 : i32
    return %c0_i32, %c0_i32_0 : i32, i32
  }
  func.func @transform_3(%arg0: i32) -> (i32, i32) {
    %c0_i32 = arith.constant 0 : i32
    %c0_i32_0 = arith.constant 0 : i32
    %c0_i32_1 = arith.constant 0 : i32
    return %c0_i32, %c0_i32_0 : i32, i32
  }
  func.func @transform_4(%arg0: i32) -> (i32, i32) {
    %c0_i32 = arith.constant 0 : i32
    %c0_i32_0 = arith.constant 0 : i32
    return %arg0, %c0_i32 : i32, i32
  }
}

module attributes {stable_mosaic.version = 11 : i64} {
  func.func @_linear_kernel(%arg0: i32, %arg1: i32, %arg2: i32, %arg3: memref<16x128xf32, #tpu.memory_space<vmem>>, %arg4: memref<128x128xf32, #tpu.memory_space<vmem>>, %arg5: memref<1x128xf32, #tpu.memory_space<vmem>>, %arg6: memref<16x128xf32, #tpu.memory_space<vmem>>, %arg7: memref<16x128xf32, #tpu.memory_space<vmem>>) attributes {dimension_semantics = [#tpu.dimension_semantics<parallel>, #tpu.dimension_semantics<parallel>, #tpu.dimension_semantics<arbitrary>], iteration_bounds = array<i64: 1, 1, 1>, scalar_prefetch = 0 : i64, scratch_operands = 1 : i64, tpu.core_type = #tpu.core_type<tc>, window_params = [{transform_indices = @transform_0, window_bounds = array<i64: 16, 128>}, {transform_indices = @transform_1, window_bounds = array<i64: 128, 128>}, {transform_indices = @transform_2, window_bounds = array<i64: 1, 128>}, {transform_indices = @transform_3, window_bounds = array<i64: 16, 128>}]} {
    %c0_i32 = arith.constant 0 : i32
    %0 = arith.cmpi eq, %arg2, %c0_i32 : i32
    %1 = arith.extui %0 : i1 to i32
    %c0_i32_0 = arith.constant 0 : i32
    %2 = arith.cmpi ne, %1, %c0_i32_0 : i32
    scf.if %2 {
      %cst_10 = arith.constant 0.000000e+00 : f32
      %14 = vector.broadcast %cst_10 : f32 to vector<16x128xf32>
      %c0_11 = arith.constant 0 : index
      %c0_12 = arith.constant 0 : index
      %15 = vector.load %arg7[%c0_11, %c0_12] : memref<16x128xf32, #tpu.memory_space<vmem>>, vector<16x128xf32>
      tpu.vector_store %arg7[%c0_11, %c0_12], %14 {strides = array<i32>} : memref<16x128xf32, #tpu.memory_space<vmem>>, vector<16x128xf32>,
    } else {
    }
    %c0 = arith.constant 0 : index
    %c0_1 = arith.constant 0 : index
    %3 = vector.load %arg7[%c0, %c0_1] : memref<16x128xf32, #tpu.memory_space<vmem>>, vector<16x128xf32>
    %c0_2 = arith.constant 0 : index
    %c0_3 = arith.constant 0 : index
    %4 = vector.load %arg3[%c0_2, %c0_3] : memref<16x128xf32, #tpu.memory_space<vmem>>, vector<16x128xf32>
    %5 = arith.truncf %4 : vector<16x128xf32> to vector<16x128xbf16>
    %c0_4 = arith.constant 0 : index
    %c0_5 = arith.constant 0 : index
    %6 = vector.load %arg4[%c0_4, %c0_5] : memref<128x128xf32, #tpu.memory_space<vmem>>, vector<128x128xf32>
    %7 = arith.truncf %6 : vector<128x128xf32> to vector<128x128xbf16>
    %cst = arith.constant dense<0.000000e+00> : vector<16x128xf32>
    %8 = tpu.matmul %5, %7, %cst {dimension_numbers = #tpu.dot_dimension_numbers<[1], [0], [0], [1], [0, 0, 1, 1], [], []>} : vector<16x128xbf16>, vector<128x128xbf16>, vector<16x128xf32> -> vector<16x128xf32>
    %9 = arith.addf %3, %8 : vector<16x128xf32>
    %c0_6 = arith.constant 0 : index
    %c0_7 = arith.constant 0 : index
    %10 = vector.load %arg7[%c0_6, %c0_7] : memref<16x128xf32, #tpu.memory_space<vmem>>, vector<16x128xf32>
    tpu.vector_store %arg7[%c0_6, %c0_7], %9 {strides = array<i32>} : memref<16x128xf32, #tpu.memory_space<vmem>>, vector<16x128xf32>,
    %c0_i32_8 = arith.constant 0 : i32
    %11 = arith.cmpi eq, %arg2, %c0_i32_8 : i32
    %12 = arith.extui %11 : i1 to i32
    %c0_i32_9 = arith.constant 0 : i32
    %13 = arith.cmpi ne, %12, %c0_i32_9 : i32
    scf.if %13 {
      %c0_10 = arith.constant 0 : index
      %c0_11 = arith.constant 0 : index
      %14 = vector.load %arg7[%c0_10, %c0_11] : memref<16x128xf32, #tpu.memory_space<vmem>>, vector<16x128xf32>
      %c0_12 = arith.constant 0 : index
      %c0_13 = arith.constant 0 : index
      %15 = vector.load %arg5[%c0_12, %c0_13] : memref<1x128xf32, #tpu.memory_space<vmem>>, vector<1x128xf32>
      %16 = vector.broadcast %15 : vector<1x128xf32> to vector<16x128xf32>
      %17 = arith.addf %14, %16 : vector<16x128xf32>
      %c0_14 = arith.constant 0 : index
      %c0_15 = arith.constant 0 : index
      %18 = vector.load %arg6[%c0_14, %c0_15] : memref<16x128xf32, #tpu.memory_space<vmem>>, vector<16x128xf32>
      tpu.vector_store %arg6[%c0_14, %c0_15], %17 {strides = array<i32>} : memref<16x128xf32, #tpu.memory_space<vmem>>, vector<16x128xf32>,
    } else {
    }
    return
  }
  func.func @transform_0(%arg0: i32, %arg1: i32, %arg2: i32) -> (i32, i32) {
    %c0_i32 = arith.constant 0 : i32
    return %arg0, %arg2 : i32, i32
  }
  func.func @transform_1(%arg0: i32, %arg1: i32, %arg2: i32) -> (i32, i32) {
    %c0_i32 = arith.constant 0 : i32
    return %arg2, %arg1 : i32, i32
  }
  func.func @transform_2(%arg0: i32, %arg1: i32, %arg2: i32) -> (i32, i32) {
    %c0_i32 = arith.constant 0 : i32
    %c0_i32_0 = arith.constant 0 : i32
    return %c0_i32, %arg1 : i32, i32
  }
  func.func @transform_3(%arg0: i32, %arg1: i32, %arg2: i32) -> (i32, i32) {
    %c0_i32 = arith.constant 0 : i32
    return %arg0, %arg1 : i32, i32
  }
}

module attributes {stable_mosaic.version = 11 : i64} {
  func.func @_attn_kernel(%arg0: i32, %arg1: memref<1x8x32xf32, #tpu.memory_space<vmem>>, %arg2: memref<1x8x32xf32, #tpu.memory_space<vmem>>, %arg3: memref<1x8x32xf32, #tpu.memory_space<vmem>>, %arg4: memref<1x8x8xf32, #tpu.memory_space<vmem>>, %arg5: memref<1x8x32xf32, #tpu.memory_space<vmem>>) attributes {dimension_semantics = [#tpu.dimension_semantics<parallel>], iteration_bounds = array<i64: 2>, scalar_prefetch = 0 : i64, scratch_operands = 0 : i64, tpu.core_type = #tpu.core_type<tc>, window_params = [{transform_indices = @transform_0, window_bounds = array<i64: 1, 8, 32>}, {transform_indices = @transform_1, window_bounds = array<i64: 1, 8, 32>}, {transform_indices = @transform_2, window_bounds = array<i64: 1, 8, 32>}, {transform_indices = @transform_3, window_bounds = array<i64: 1, 8, 8>}, {transform_indices = @transform_4, window_bounds = array<i64: 1, 8, 32>}]} {
    %c0 = arith.constant 0 : index
    %c0_0 = arith.constant 0 : index
    %c0_1 = arith.constant 0 : index
    %0 = vector.load %arg1[%c0, %c0_0, %c0_1] : memref<1x8x32xf32, #tpu.memory_space<vmem>>, vector<1x8x32xf32>
    %1 = vector.shape_cast %0 : vector<1x8x32xf32> to vector<8x32xf32>
    %c0_2 = arith.constant 0 : index
    %c0_3 = arith.constant 0 : index
    %c0_4 = arith.constant 0 : index
    %2 = vector.load %arg2[%c0_2, %c0_3, %c0_4] : memref<1x8x32xf32, #tpu.memory_space<vmem>>, vector<1x8x32xf32>
    %3 = vector.shape_cast %2 : vector<1x8x32xf32> to vector<8x32xf32>
    %c0_5 = arith.constant 0 : index
    %c0_6 = arith.constant 0 : index
    %c0_7 = arith.constant 0 : index
    %4 = vector.load %arg3[%c0_5, %c0_6, %c0_7] : memref<1x8x32xf32, #tpu.memory_space<vmem>>, vector<1x8x32xf32>
    %5 = vector.shape_cast %4 : vector<1x8x32xf32> to vector<8x32xf32>
    %c0_8 = arith.constant 0 : index
    %c0_9 = arith.constant 0 : index
    %c0_10 = arith.constant 0 : index
    %6 = vector.load %arg4[%c0_8, %c0_9, %c0_10] : memref<1x8x8xf32, #tpu.memory_space<vmem>>, vector<1x8x8xf32>
    %7 = vector.shape_cast %6 : vector<1x8x8xf32> to vector<8x8xf32>
    %cst = arith.constant 0.000000e+00 : f32
    %8 = vector.broadcast %cst : f32 to vector<8x8xf32>
    %9 = arith.cmpf one, %7, %8 : vector<8x8xf32>
    %10 = vector.extract_strided_slice %1 {offsets = [0, 0], sizes = [8, 8], strides = [1, 1]} : vector<8x32xf32> to vector<8x8xf32>
    %11 = arith.truncf %10 : vector<8x8xf32> to vector<8x8xbf16>
    %12 = vector.extract_strided_slice %3 {offsets = [0, 0], sizes = [8, 8], strides = [1, 1]} : vector<8x32xf32> to vector<8x8xf32>
    %13 = arith.truncf %12 : vector<8x8xf32> to vector<8x8xbf16>
    %14 = vector.extract_strided_slice %5 {offsets = [0, 0], sizes = [8, 8], strides = [1, 1]} : vector<8x32xf32> to vector<8x8xf32>
    %15 = arith.truncf %14 : vector<8x8xf32> to vector<8x8xbf16>
    %cst_11 = arith.constant dense<0.000000e+00> : vector<8x8xf32>
    %16 = tpu.matmul %11, %13, %cst_11 {dimension_numbers = #tpu.dot_dimension_numbers<[1], [1], [0], [0], [0, 0, 1, 0], [], []>} : vector<8x8xbf16>, vector<8x8xbf16>, vector<8x8xf32> -> vector<8x8xf32>
    %cst_12 = arith.constant 0.353553385 : f32
    %17 = vector.broadcast %cst_12 : f32 to vector<8x8xf32>
    %18 = arith.mulf %16, %17 : vector<8x8xf32>
    %cst_13 = arith.constant -1.000000e+09 : f32
    %19 = vector.broadcast %cst_13 : f32 to vector<8x8xf32>
    %20 = arith.select %9, %18, %19 : vector<8x8xi1>, vector<8x8xf32>
    %cst_14 = arith.constant dense<0xFF800000> : vector<8xf32>
    %21 = vector.multi_reduction <maximumf>, %20, %cst_14 [1] : vector<8x8xf32> to vector<8xf32>
    %22 = vector.shape_cast %21 : vector<8xf32> to vector<8x1xf32>
    %23 = vector.broadcast %22 : vector<8x1xf32> to vector<8x8xf32>
    %24 = arith.subf %20, %23 : vector<8x8xf32>
    %25 = math.exp %24 : vector<8x8xf32>
    %cst_15 = arith.constant dense<0.000000e+00> : vector<8xf32>
    %26 = vector.multi_reduction <add>, %25, %cst_15 [1] : vector<8x8xf32> to vector<8xf32>
    %27 = vector.shape_cast %26 : vector<8xf32> to vector<8x1xf32>
    %28 = tpu.reciprocal %27 {approx = true} : vector<8x1xf32> -> vector<8x1xf32>
    %29 = vector.broadcast %28 : vector<8x1xf32> to vector<8x8xf32>
    %30 = arith.mulf %25, %29 : vector<8x8xf32>
    %31 = arith.truncf %30 : vector<8x8xf32> to vector<8x8xbf16>
    %cst_16 = arith.constant dense<0.000000e+00> : vector<8x8xf32>
    %32 = tpu.matmul %31, %15, %cst_16 {dimension_numbers = #tpu.dot_dimension_numbers<[1], [0], [0], [1], [0, 0, 1, 1], [], []>} : vector<8x8xbf16>, vector<8x8xbf16>, vector<8x8xf32> -> vector<8x8xf32>
    %33 = vector.extract_strided_slice %1 {offsets = [0, 8], sizes = [8, 8], strides = [1, 1]} : vector<8x32xf32> to vector<8x8xf32>
    %34 = arith.truncf %33 : vector<8x8xf32> to vector<8x8xbf16>
    %35 = vector.extract_strided_slice %3 {offsets = [0, 8], sizes = [8, 8], strides = [1, 1]} : vector<8x32xf32> to vector<8x8xf32>
    %36 = arith.truncf %35 : vector<8x8xf32> to vector<8x8xbf16>
    %37 = vector.extract_strided_slice %5 {offsets = [0, 8], sizes = [8, 8], strides = [1, 1]} : vector<8x32xf32> to vector<8x8xf32>
    %38 = arith.truncf %37 : vector<8x8xf32> to vector<8x8xbf16>
    %cst_17 = arith.constant dense<0.000000e+00> : vector<8x8xf32>
    %39 = tpu.matmul %34, %36, %cst_17 {dimension_numbers = #tpu.dot_dimension_numbers<[1], [1], [0], [0], [0, 0, 1, 0], [], []>} : vector<8x8xbf16>, vector<8x8xbf16>, vector<8x8xf32> -> vector<8x8xf32>
    %cst_18 = arith.constant 0.353553385 : f32
    %40 = vector.broadcast %cst_18 : f32 to vector<8x8xf32>
    %41 = arith.mulf %39, %40 : vector<8x8xf32>
    %cst_19 = arith.constant -1.000000e+09 : f32
    %42 = vector.broadcast %cst_19 : f32 to vector<8x8xf32>
    %43 = arith.select %9, %41, %42 : vector<8x8xi1>, vector<8x8xf32>
    %cst_20 = arith.constant dense<0xFF800000> : vector<8xf32>
    %44 = vector.multi_reduction <maximumf>, %43, %cst_20 [1] : vector<8x8xf32> to vector<8xf32>
    %45 = vector.shape_cast %44 : vector<8xf32> to vector<8x1xf32>
    %46 = vector.broadcast %45 : vector<8x1xf32> to vector<8x8xf32>
    %47 = arith.subf %43, %46 : vector<8x8xf32>
    %48 = math.exp %47 : vector<8x8xf32>
    %cst_21 = arith.constant dense<0.000000e+00> : vector<8xf32>
    %49 = vector.multi_reduction <add>, %48, %cst_21 [1] : vector<8x8xf32> to vector<8xf32>
    %50 = vector.shape_cast %49 : vector<8xf32> to vector<8x1xf32>
    %51 = tpu.reciprocal %50 {approx = true} : vector<8x1xf32> -> vector<8x1xf32>
    %52 = vector.broadcast %51 : vector<8x1xf32> to vector<8x8xf32>
    %53 = arith.mulf %48, %52 : vector<8x8xf32>
    %54 = arith.truncf %53 : vector<8x8xf32> to vector<8x8xbf16>
    %cst_22 = arith.constant dense<0.000000e+00> : vector<8x8xf32>
    %55 = tpu.matmul %54, %38, %cst_22 {dimension_numbers = #tpu.dot_dimension_numbers<[1], [0], [0], [1], [0, 0, 1, 1], [], []>} : vector<8x8xbf16>, vector<8x8xbf16>, vector<8x8xf32> -> vector<8x8xf32>
    %56 = vector.extract_strided_slice %1 {offsets = [0, 16], sizes = [8, 8], strides = [1, 1]} : vector<8x32xf32> to vector<8x8xf32>
    %57 = arith.truncf %56 : vector<8x8xf32> to vector<8x8xbf16>
    %58 = vector.extract_strided_slice %3 {offsets = [0, 16], sizes = [8, 8], strides = [1, 1]} : vector<8x32xf32> to vector<8x8xf32>
    %59 = arith.truncf %58 : vector<8x8xf32> to vector<8x8xbf16>
    %60 = vector.extract_strided_slice %5 {offsets = [0, 16], sizes = [8, 8], strides = [1, 1]} : vector<8x32xf32> to vector<8x8xf32>
    %61 = arith.truncf %60 : vector<8x8xf32> to vector<8x8xbf16>
    %cst_23 = arith.constant dense<0.000000e+00> : vector<8x8xf32>
    %62 = tpu.matmul %57, %59, %cst_23 {dimension_numbers = #tpu.dot_dimension_numbers<[1], [1], [0], [0], [0, 0, 1, 0], [], []>} : vector<8x8xbf16>, vector<8x8xbf16>, vector<8x8xf32> -> vector<8x8xf32>
    %cst_24 = arith.constant 0.353553385 : f32
    %63 = vector.broadcast %cst_24 : f32 to vector<8x8xf32>
    %64 = arith.mulf %62, %63 : vector<8x8xf32>
    %cst_25 = arith.constant -1.000000e+09 : f32
    %65 = vector.broadcast %cst_25 : f32 to vector<8x8xf32>
    %66 = arith.select %9, %64, %65 : vector<8x8xi1>, vector<8x8xf32>
    %cst_26 = arith.constant dense<0xFF800000> : vector<8xf32>
    %67 = vector.multi_reduction <maximumf>, %66, %cst_26 [1] : vector<8x8xf32> to vector<8xf32>
    %68 = vector.shape_cast %67 : vector<8xf32> to vector<8x1xf32>
    %69 = vector.broadcast %68 : vector<8x1xf32> to vector<8x8xf32>
    %70 = arith.subf %66, %69 : vector<8x8xf32>
    %71 = math.exp %70 : vector<8x8xf32>
    %cst_27 = arith.constant dense<0.000000e+00> : vector<8xf32>
    %72 = vector.multi_reduction <add>, %71, %cst_27 [1] : vector<8x8xf32> to vector<8xf32>
    %73 = vector.shape_cast %72 : vector<8xf32> to vector<8x1xf32>
    %74 = tpu.reciprocal %73 {approx = true} : vector<8x1xf32> -> vector<8x1xf32>
    %75 = vector.broadcast %74 : vector<8x1xf32> to vector<8x8xf32>
    %76 = arith.mulf %71, %75 : vector<8x8xf32>
    %77 = arith.truncf %76 : vector<8x8xf32> to vector<8x8xbf16>
    %cst_28 = arith.constant dense<0.000000e+00> : vector<8x8xf32>
    %78 = tpu.matmul %77, %61, %cst_28 {dimension_numbers = #tpu.dot_dimension_numbers<[1], [0], [0], [1], [0, 0, 1, 1], [], []>} : vector<8x8xbf16>, vector<8x8xbf16>, vector<8x8xf32> -> vector<8x8xf32>
    %79 = vector.extract_strided_slice %1 {offsets = [0, 24], sizes = [8, 8], strides = [1, 1]} : vector<8x32xf32> to vector<8x8xf32>
    %80 = arith.truncf %79 : vector<8x8xf32> to vector<8x8xbf16>
    %81 = vector.extract_strided_slice %3 {offsets = [0, 24], sizes = [8, 8], strides = [1, 1]} : vector<8x32xf32> to vector<8x8xf32>
    %82 = arith.truncf %81 : vector<8x8xf32> to vector<8x8xbf16>
    %83 = vector.extract_strided_slice %5 {offsets = [0, 24], sizes = [8, 8], strides = [1, 1]} : vector<8x32xf32> to vector<8x8xf32>
    %84 = arith.truncf %83 : vector<8x8xf32> to vector<8x8xbf16>
    %cst_29 = arith.constant dense<0.000000e+00> : vector<8x8xf32>
    %85 = tpu.matmul %80, %82, %cst_29 {dimension_numbers = #tpu.dot_dimension_numbers<[1], [1], [0], [0], [0, 0, 1, 0], [], []>} : vector<8x8xbf16>, vector<8x8xbf16>, vector<8x8xf32> -> vector<8x8xf32>
    %cst_30 = arith.constant 0.353553385 : f32
    %86 = vector.broadcast %cst_30 : f32 to vector<8x8xf32>
    %87 = arith.mulf %85, %86 : vector<8x8xf32>
    %cst_31 = arith.constant -1.000000e+09 : f32
    %88 = vector.broadcast %cst_31 : f32 to vector<8x8xf32>
    %89 = arith.select %9, %87, %88 : vector<8x8xi1>, vector<8x8xf32>
    %cst_32 = arith.constant dense<0xFF800000> : vector<8xf32>
    %90 = vector.multi_reduction <maximumf>, %89, %cst_32 [1] : vector<8x8xf32> to vector<8xf32>
    %91 = vector.shape_cast %90 : vector<8xf32> to vector<8x1xf32>
    %92 = vector.broadcast %91 : vector<8x1xf32> to vector<8x8xf32>
    %93 = arith.subf %89, %92 : vector<8x8xf32>
    %94 = math.exp %93 : vector<8x8xf32>
    %cst_33 = arith.constant dense<0.000000e+00> : vector<8xf32>
    %95 = vector.multi_reduction <add>, %94, %cst_33 [1] : vector<8x8xf32> to vector<8xf32>
    %96 = vector.shape_cast %95 : vector<8xf32> to vector<8x1xf32>
    %97 = tpu.reciprocal %96 {approx = true} : vector<8x1xf32> -> vector<8x1xf32>
    %98 = vector.broadcast %97 : vector<8x1xf32> to vector<8x8xf32>
    %99 = arith.mulf %94, %98 : vector<8x8xf32>
    %100 = arith.truncf %99 : vector<8x8xf32> to vector<8x8xbf16>
    %cst_34 = arith.constant dense<0.000000e+00> : vector<8x8xf32>
    %101 = tpu.matmul %100, %84, %cst_34 {dimension_numbers = #tpu.dot_dimension_numbers<[1], [0], [0], [1], [0, 0, 1, 1], [], []>} : vector<8x8xbf16>, vector<8x8xbf16>, vector<8x8xf32> -> vector<8x8xf32>
    %102 = tpu.concatenate %32, %55, %78, %101 in 1 : vector<8x8xf32>, vector<8x8xf32>, vector<8x8xf32>, vector<8x8xf32> -> vector<8x32xf32>
    %c0_35 = arith.constant 0 : index
    %c0_36 = arith.constant 0 : index
    %c0_37 = arith.constant 0 : index
    %103 = vector.load %arg5[%c0_35, %c0_36, %c0_37] : memref<1x8x32xf32, #tpu.memory_space<vmem>>, vector<1x8x32xf32>
    %104 = vector.shape_cast %103 : vector<1x8x32xf32> to vector<8x32xf32>
    %105 = vector.shape_cast %102 : vector<8x32xf32> to vector<1x8x32xf32>
    tpu.vector_store %arg5[%c0_35, %c0_36, %c0_37], %105 {strides = array<i32>} : memref<1x8x32xf32, #tpu.memory_space<vmem>>, vector<1x8x32xf32>,
    return
  }
  func.func @transform_0(%arg0: i32) -> (i32, i32, i32) {
    %c0_i32 = arith.constant 0 : i32
    %c0_i32_0 = arith.constant 0 : i32
    %c0_i32_1 = arith.constant 0 : i32
    return %arg0, %c0_i32, %c0_i32_0 : i32, i32, i32
  }
  func.func @transform_1(%arg0: i32) -> (i32, i32, i32) {
    %c0_i32 = arith.constant 0 : i32
    %c0_i32_0 = arith.constant 0 : i32
    %c0_i32_1 = arith.constant 0 : i32
    return %arg0, %c0_i32, %c0_i32_0 : i32, i32, i32
  }
  func.func @transform_2(%arg0: i32) -> (i32, i32, i32) {
    %c0_i32 = arith.constant 0 : i32
    %c0_i32_0 = arith.constant 0 : i32
    %c0_i32_1 = arith.constant 0 : i32
    return %arg0, %c0_i32, %c0_i32_0 : i32, i32, i32
  }
  func.func @transform_3(%arg0: i32) -> (i32, i32, i32) {
    %c0_i32 = arith.constant 0 : i32
    %c0_i32_0 = arith.constant 0 : i32
    %c0_i32_1 = arith.constant 0 : i32
    return %arg0, %c0_i32, %c0_i32_0 : i32, i32, i32
  }
  func.func @transform_4(%arg0: i32) -> (i32, i32, i32) {
    %c0_i32 = arith.constant 0 : i32
    %c0_i32_0 = arith.constant 0 : i32
    %c0_i32_1 = arith.constant 0 : i32
    return %arg0, %c0_i32, %c0_i32_0 : i32, i32, i32
  }
}

module attributes {stable_mosaic.version = 11 : i64} {
  func.func @_linear_kernel(%arg0: i32, %arg1: i32, %arg2: i32, %arg3: memref<16x128xf32, #tpu.memory_space<vmem>>, %arg4: memref<128x128xf32, #tpu.memory_space<vmem>>, %arg5: memref<1x128xf32, #tpu.memory_space<vmem>>, %arg6: memref<16x128xf32, #tpu.memory_space<vmem>>, %arg7: memref<16x128xf32, #tpu.memory_space<vmem>>) attributes {dimension_semantics = [#tpu.dimension_semantics<parallel>, #tpu.dimension_semantics<parallel>, #tpu.dimension_semantics<arbitrary>], iteration_bounds = array<i64: 1, 1, 1>, scalar_prefetch = 0 : i64, scratch_operands = 1 : i64, tpu.core_type = #tpu.core_type<tc>, window_params = [{transform_indices = @transform_0, window_bounds = array<i64: 16, 128>}, {transform_indices = @transform_1, window_bounds = array<i64: 128, 128>}, {transform_indices = @transform_2, window_bounds = array<i64: 1, 128>}, {transform_indices = @transform_3, window_bounds = array<i64: 16, 128>}]} {
    %c0_i32 = arith.constant 0 : i32
    %0 = arith.cmpi eq, %arg2, %c0_i32 : i32
    %1 = arith.extui %0 : i1 to i32
    %c0_i32_0 = arith.constant 0 : i32
    %2 = arith.cmpi ne, %1, %c0_i32_0 : i32
    scf.if %2 {
      %cst_10 = arith.constant 0.000000e+00 : f32
      %14 = vector.broadcast %cst_10 : f32 to vector<16x128xf32>
      %c0_11 = arith.constant 0 : index
      %c0_12 = arith.constant 0 : index
      %15 = vector.load %arg7[%c0_11, %c0_12] : memref<16x128xf32, #tpu.memory_space<vmem>>, vector<16x128xf32>
      tpu.vector_store %arg7[%c0_11, %c0_12], %14 {strides = array<i32>} : memref<16x128xf32, #tpu.memory_space<vmem>>, vector<16x128xf32>,
    } else {
    }
    %c0 = arith.constant 0 : index
    %c0_1 = arith.constant 0 : index
    %3 = vector.load %arg7[%c0, %c0_1] : memref<16x128xf32, #tpu.memory_space<vmem>>, vector<16x128xf32>
    %c0_2 = arith.constant 0 : index
    %c0_3 = arith.constant 0 : index
    %4 = vector.load %arg3[%c0_2, %c0_3] : memref<16x128xf32, #tpu.memory_space<vmem>>, vector<16x128xf32>
    %5 = arith.truncf %4 : vector<16x128xf32> to vector<16x128xbf16>
    %c0_4 = arith.constant 0 : index
    %c0_5 = arith.constant 0 : index
    %6 = vector.load %arg4[%c0_4, %c0_5] : memref<128x128xf32, #tpu.memory_space<vmem>>, vector<128x128xf32>
    %7 = arith.truncf %6 : vector<128x128xf32> to vector<128x128xbf16>
    %cst = arith.constant dense<0.000000e+00> : vector<16x128xf32>
    %8 = tpu.matmul %5, %7, %cst {dimension_numbers = #tpu.dot_dimension_numbers<[1], [0], [0], [1], [0, 0, 1, 1], [], []>} : vector<16x128xbf16>, vector<128x128xbf16>, vector<16x128xf32> -> vector<16x128xf32>
    %9 = arith.addf %3, %8 : vector<16x128xf32>
    %c0_6 = arith.constant 0 : index
    %c0_7 = arith.constant 0 : index
    %10 = vector.load %arg7[%c0_6, %c0_7] : memref<16x128xf32, #tpu.memory_space<vmem>>, vector<16x128xf32>
    tpu.vector_store %arg7[%c0_6, %c0_7], %9 {strides = array<i32>} : memref<16x128xf32, #tpu.memory_space<vmem>>, vector<16x128xf32>,
    %c0_i32_8 = arith.constant 0 : i32
    %11 = arith.cmpi eq, %arg2, %c0_i32_8 : i32
    %12 = arith.extui %11 : i1 to i32
    %c0_i32_9 = arith.constant 0 : i32
    %13 = arith.cmpi ne, %12, %c0_i32_9 : i32
    scf.if %13 {
      %c0_10 = arith.constant 0 : index
      %c0_11 = arith.constant 0 : index
      %14 = vector.load %arg7[%c0_10, %c0_11] : memref<16x128xf32, #tpu.memory_space<vmem>>, vector<16x128xf32>
      %c0_12 = arith.constant 0 : index
      %c0_13 = arith.constant 0 : index
      %15 = vector.load %arg5[%c0_12, %c0_13] : memref<1x128xf32, #tpu.memory_space<vmem>>, vector<1x128xf32>
      %16 = vector.broadcast %15 : vector<1x128xf32> to vector<16x128xf32>
      %17 = arith.addf %14, %16 : vector<16x128xf32>
      %cst_14 = arith.constant 0.000000e+00 : f32
      %18 = vector.broadcast %cst_14 : f32 to vector<16x128xf32>
      %19 = arith.maximumf %17, %18 : vector<16x128xf32>
      %c0_15 = arith.constant 0 : index
      %c0_16 = arith.constant 0 : index
      %20 = vector.load %arg6[%c0_15, %c0_16] : memref<16x128xf32, #tpu.memory_space<vmem>>, vector<16x128xf32>
      tpu.vector_store %arg6[%c0_15, %c0_16], %19 {strides = array<i32>} : memref<16x128xf32, #tpu.memory_space<vmem>>, vector<16x128xf32>,
    } else {
    }
    return
  }
  func.func @transform_0(%arg0: i32, %arg1: i32, %arg2: i32) -> (i32, i32) {
    %c0_i32 = arith.constant 0 : i32
    return %arg0, %arg2 : i32, i32
  }
  func.func @transform_1(%arg0: i32, %arg1: i32, %arg2: i32) -> (i32, i32) {
    %c0_i32 = arith.constant 0 : i32
    return %arg2, %arg1 : i32, i32
  }
  func.func @transform_2(%arg0: i32, %arg1: i32, %arg2: i32) -> (i32, i32) {
    %c0_i32 = arith.constant 0 : i32
    %c0_i32_0 = arith.constant 0 : i32
    return %c0_i32, %arg1 : i32, i32
  }
  func.func @transform_3(%arg0: i32, %arg1: i32, %arg2: i32) -> (i32, i32) {
    %c0_i32 = arith.constant 0 : i32
    return %arg0, %arg1 : i32, i32
  }
}

module attributes {stable_mosaic.version = 11 : i64} {
  func.func @_layernorm_kernel(%arg0: i32, %arg1: memref<16x32xf32, #tpu.memory_space<vmem>>, %arg2: memref<1x32xf32, #tpu.memory_space<vmem>>, %arg3: memref<1x32xf32, #tpu.memory_space<vmem>>, %arg4: memref<16x32xf32, #tpu.memory_space<vmem>>) attributes {dimension_semantics = [#tpu.dimension_semantics<parallel>], iteration_bounds = array<i64: 1>, scalar_prefetch = 0 : i64, scratch_operands = 0 : i64, tpu.core_type = #tpu.core_type<tc>, window_params = [{transform_indices = @transform_0, window_bounds = array<i64: 16, 32>}, {pipeline_mode = #tpu.pipeline_mode<synchronous>, transform_indices = @transform_1, window_bounds = array<i64: 1, 32>}, {pipeline_mode = #tpu.pipeline_mode<synchronous>, transform_indices = @transform_2, window_bounds = array<i64: 1, 32>}, {transform_indices = @transform_3, window_bounds = array<i64: 16, 32>}]} {
    %c0 = arith.constant 0 : index
    %c0_0 = arith.constant 0 : index
    %0 = vector.load %arg1[%c0, %c0_0] : memref<16x32xf32, #tpu.memory_space<vmem>>, vector<16x32xf32>
    %cst = arith.constant dense<0.000000e+00> : vector<16xf32>
    %1 = vector.multi_reduction <add>, %0, %cst [1] : vector<16x32xf32> to vector<16xf32>
    %2 = vector.shape_cast %1 : vector<16xf32> to vector<16x1xf32>
    %cst_1 = arith.constant 3.200000e+01 : f32
    %3 = vector.broadcast %cst_1 : f32 to vector<16x1xf32>
    %4 = arith.divf %2, %3 : vector<16x1xf32>
    %5 = vector.broadcast %4 : vector<16x1xf32> to vector<16x32xf32>
    %6 = arith.subf %0, %5 : vector<16x32xf32>
    %7 = arith.mulf %6, %6 : vector<16x32xf32>
    %cst_2 = arith.constant dense<0.000000e+00> : vector<16xf32>
    %8 = vector.multi_reduction <add>, %7, %cst_2 [1] : vector<16x32xf32> to vector<16xf32>
    %9 = vector.shape_cast %8 : vector<16xf32> to vector<16x1xf32>
    %cst_3 = arith.constant 3.200000e+01 : f32
    %10 = vector.broadcast %cst_3 : f32 to vector<16x1xf32>
    %11 = arith.divf %9, %10 : vector<16x1xf32>
    %12 = vector.broadcast %4 : vector<16x1xf32> to vector<16x32xf32>
    %13 = arith.subf %0, %12 : vector<16x32xf32>
    %cst_4 = arith.constant 9.99999974E-6 : f32
    %14 = vector.broadcast %cst_4 : f32 to vector<16x1xf32>
    %15 = arith.addf %11, %14 : vector<16x1xf32>
    %16 = math.rsqrt %15 : vector<16x1xf32>
    %17 = vector.broadcast %16 : vector<16x1xf32> to vector<16x32xf32>
    %18 = arith.mulf %13, %17 : vector<16x32xf32>
    %c0_5 = arith.constant 0 : index
    %c0_6 = arith.constant 0 : index
    %19 = vector.load %arg2[%c0_5, %c0_6] : memref<1x32xf32, #tpu.memory_space<vmem>>, vector<1x32xf32>
    %20 = vector.broadcast %19 : vector<1x32xf32> to vector<16x32xf32>
    %21 = arith.mulf %18, %20 : vector<16x32xf32>
    %c0_7 = arith.constant 0 : index
    %c0_8 = arith.constant 0 : index
    %22 = vector.load %arg3[%c0_7, %c0_8] : memref<1x32xf32, #tpu.memory_space<vmem>>, vector<1x32xf32>
    %23 = vector.broadcast %22 : vector<1x32xf32> to vector<16x32xf32>
    %24 = arith.addf %21, %23 : vector<16x32xf32>
    %c0_9 = arith.constant 0 : index
    %c0_10 = arith.constant 0 : index
    %25 = vector.load %arg4[%c0_9, %c0_10] : memref<16x32xf32, #tpu.memory_space<vmem>>, vector<16x32xf32>
    tpu.vector_store %arg4[%c0_9, %c0_10], %24 {strides = array<i32>} : memref<16x32xf32, #tpu.memory_space<vmem>>, vector<16x32xf32>,
    return
  }
  func.func @transform_0(%arg0: i32) -> (i32, i32) {
    %c0_i32 = arith.constant 0 : i32
    %c0_i32_0 = arith.constant 0 : i32
    return %arg0, %c0_i32 : i32, i32
  }
  func.func @transform_1(%arg0: i32) -> (i32, i32) {
    %c0_i32 = arith.constant 0 : i32
    %c0_i32_0 = arith.constant 0 : i32
    %c0_i32_1 = arith.constant 0 : i32
    return %c0_i32, %c0_i32_0 : i32, i32
  }
  func.func @transform_2(%arg0: i32) -> (i32, i32) {
    %c0_i32 = arith.constant 0 : i32
    %c0_i32_0 = arith.constant 0 : i32
    %c0_i32_1 = arith.constant 0 : i32
    return %c0_i32, %c0_i32_0 : i32, i32
  }
  func.func @transform_3(%arg0: i32) -> (i32, i32) {
    %c0_i32 = arith.constant 0 : i32
    %c0_i32_0 = arith.constant 0 : i32
    return %arg0, %c0_i32 : i32, i32
  }
}

</mosaic_0001>

<llo_original>
// kernel: fwd.41
$region0: #{fwd.41}
  #allocation0 [shape = 'u32[]', space=smem, size = 0x4, offset = 0x4, fixed_abs, tag = 'smem constant byte address 0x4 - core index']
  #allocation1 [shape = 'u32[144,128]{1,0:T(1,128)}', space=vmem, size = 0x12000, scoped, tag = 'internal scratch']
  #allocation2 [shape = 'f32[16,128]{1,0:T(8,128)}', space=vmem, size = 0x2000, scoped, tag = 'scratch operand']
  %s0 = inlined_call_operand.vmem [shape: f32[16,128], index: 0, kind: input, shape index: {}]
  %s1 = inlined_call_operand.vmem [shape: f32[128,128], index: 1, kind: input, shape index: {}]
  %s2 = inlined_call_operand.vmem [shape: f32[1,128], index: 2, kind: input, shape index: {}]
  %s3 = inlined_call_operand.vmem [shape: f32[16,128], index: 3, kind: output, shape index: {}]
  %s4 = sld [smem:[#allocation0]]
  $region30: #{fwd.41} parent=0
    _
  %s6 = ssub.s32 1, %s4
  %s7 = scalar_select 0, %s6, %s4
  // Predicated region
  $region2: #{fwd.41} parent=0 // pred_check
    _
  $region3: #{fwd.41} parent=0 // pred_check_branch
    %9 = sbr.rel (0) target = $region5
  $region4: #{fwd.41} parent=0 // pred_region
    _
  $region5: #{fwd.41} parent=0 // pred_fallthru
    _
  // Predicated region
  $region6: #{fwd.41} parent=0 // pred_check
    _
  $region7: #{fwd.41} parent=0 // pred_check_branch
    %11 = sbr.rel (0) target = $region9
  $region8: #{fwd.41} parent=0 // pred_region
    _
  $region9: #{fwd.41} parent=0 // pred_fallthru
    _
  // Predicated region
  $region10: #{fwd.41} parent=0 // pred_check
    _
  $region11: #{fwd.41} parent=0 // pred_check_branch
    %13 = sbr.rel (0) target = $region13
  $region12: #{fwd.41} parent=0 // pred_region
    _
  $region13: #{fwd.41} parent=0 // pred_fallthru
    _
  %p15 = scmp.eq.s32.totalorder 0, 0
  // Predicated region
  $region14: #{fwd.41} parent=0 // pred_check
    %p16 = pneg %p15
  $region15: #{fwd.41} parent=0 // pred_check_branch
    %18 = sbr.rel (%p16) target = $region17
  $region16: #{fwd.41} parent=0 // pred_region
    %19 = vst [vmem:[#allocation2] sm:$0xff] 0.0
    %20 = vst [vmem:[#allocation2 + $0x8] sm:$0xff] 0.0
  $region17: #{fwd.41} parent=0 // pred_fallthru
    _
  %v21 = vld [vmem:[#allocation2] sm:$0xff]
  %v22 = vld [vmem:[#allocation2 + $0x8] sm:$0xff]
  %v23 = vld [vmem:[%s0] sm:$0xff]
  %v24 = vld [vmem:[%s0 + $0x8] sm:$0xff]
  %v25 = vpack.c.bf16 %v24, %v23
  %v26 = vld [vmem:[%s1] sm:$0xff]
  %v27 = vld [vmem:[%s1 + $0x8] sm:$0xff]
  %v28 = vld [vmem:[%s1 + $0x10] sm:$0xff]
  %v29 = vld [vmem:[%s1 + $0x18] sm:$0xff]
  %v30 = vld [vmem:[%s1 + $0x20] sm:$0xff]
  %v31 = vld [vmem:[%s1 + $0x28] sm:$0xff]
  %v32 = vld [vmem:[%s1 + $0x30] sm:$0xff]
  %v33 = vld [vmem:[%s1 + $0x38] sm:$0xff]
  %v34 = vld [vmem:[%s1 + $0x40] sm:$0xff]
  %v35 = vld [vmem:[%s1 + $0x48] sm:$0xff]
  %v36 = vld [vmem:[%s1 + $0x50] sm:$0xff]
  %v37 = vld [vmem:[%s1 + $0x58] sm:$0xff]
  %v38 = vld [vmem:[%s1 + $0x60] sm:$0xff]
  %v39 = vld [vmem:[%s1 + $0x68] sm:$0xff]
  %v40 = vld [vmem:[%s1 + $0x70] sm:$0xff]
  %v41 = vld [vmem:[%s1 + $0x78] sm:$0xff]
  %v42 = vpack.c.bf16 %v27, %v26
  %v43 = vpack.c.bf16 %v29, %v28
  %v44 = vpack.c.bf16 %v31, %v30
  %v45 = vpack.c.bf16 %v33, %v32
  %v46 = vpack.c.bf16 %v35, %v34
  %v47 = vpack.c.bf16 %v37, %v36
  %v48 = vpack.c.bf16 %v39, %v38
  %v49 = vpack.c.bf16 %v41, %v40
  %50 = vmatprep.subr.bf16.mxu0 0
  %51 = vmatpush1.bf16.msra.mxu0 %v42
  %52 = vmatprep.subr.bf16.mxu0 0
  %53 = vmatpush1.bf16.msra.mxu0 %v43
  %54 = vmatprep.subr.bf16.mxu0 0
  %55 = vmatpush1.bf16.msra.mxu0 %v44
  %56 = vmatprep.subr.bf16.mxu0 0
  %57 = vmatpush1.bf16.msra.mxu0 %v45
  %58 = vmatprep.subr.bf16.mxu0 0
  %59 = vmatpush1.bf16.msra.mxu0 %v46
  %60 = vmatprep.subr.bf16.mxu0 0
  %61 = vmatpush1.bf16.msra.mxu0 %v47
  %62 = vmatprep.subr.bf16.mxu0 0
  %63 = vmatpush1.bf16.msra.mxu0 %v48
  %64 = vmatprep.subr.bf16.mxu0 0
  %65 = vmatpush1.bf16.msra.mxu0 %v49
  %66 = vmatprep.subr.bf16.mxu0 0
  %67 = vmatpush1.bf16.msra.mxu0 0
  %68 = vmatprep.subr.bf16.mxu0 0
  %69 = vmatpush1.bf16.msra.mxu0 0
  %70 = vmatprep.subr.bf16.mxu0 0
  %71 = vmatpush1.bf16.msra.mxu0 0
  %72 = vmatprep.subr.bf16.mxu0 0
  %73 = vmatpush1.bf16.msra.mxu0 0
  %74 = vmatprep.subr.bf16.mxu0 0
  %75 = vmatpush1.bf16.msra.mxu0 0
  %76 = vmatprep.subr.bf16.mxu0 0
  %77 = vmatpush1.bf16.msra.mxu0 0
  %78 = vmatprep.subr.bf16.mxu0 0
  %79 = vmatpush1.bf16.msra.mxu0 0
  %80 = vmatprep.subr.bf16.mxu0 0
  %81 = vmatpush1.bf16.msra.mxu0 0
  %82 = vmatprep.mubr.bf16.mxu0 0
  %83 = vmatmul.mubr.bf16.gmra.mrb[0].mxu0 %v25
  %v84 = vpop.f32.mrb[0].mxu0
  %v85 = vadd.f32 0.0, %v84
  %v86 = vpop.f32.mrb[0].mxu0
  %v87 = vpop.f32.mrb[0].mxu0
  %v88 = vadd.f32 0.0, %v87
  %v89 = vpop.f32.mrb[0].mxu0
  %90 = vdwg.mxu0
  %v91 = vadd.f32 %v21, %v85
  %v92 = vadd.f32 %v22, %v88
  %93 = vst [vmem:[#allocation2] sm:$0xff] %v91
  %94 = vst [vmem:[#allocation2 + $0x8] sm:$0xff] %v92
  // Predicated region
  $region18: #{fwd.41} parent=0 // pred_check
    %p95 = pneg %p15
  $region19: #{fwd.41} parent=0 // pred_check_branch
    %97 = sbr.rel (%p95) target = $region21
  $region20: #{fwd.41} parent=0 // pred_region
    %v98 = vld [vmem:[#allocation2] sm:$0xff]
    %v99 = vld [vmem:[#allocation2 + $0x8] sm:$0xff]
    %v100 = vld [vmem:[%s2] sm:$0x1]
    %v102 = vlaneseq
    %v103 = vshrl.u32 %v102, 7
    %v104 = vsub.s32 0, %v103
    %v105 = vrot.slane %v100, %v104
    %v107 = vadd.f32 %v98, %v105
    %v108 = vadd.f32 %v99, %v105
    %109 = vst [vmem:[%s3] sm:$0xff] %v107
    %110 = vst [vmem:[%s3 + $0x8] sm:$0xff] %v108
  $region21: #{fwd.41} parent=0 // pred_fallthru
    _
  // Predicated region
  $region22: #{fwd.41} parent=0 // pred_check
    _
  $region23: #{fwd.41} parent=0 // pred_check_branch
    %112 = sbr.rel (0) target = $region25
  $region24: #{fwd.41} parent=0 // pred_region
    _
  $region25: #{fwd.41} parent=0 // pred_fallthru
    _
  // Predicated region
  $region26: #{fwd.41} parent=0 // pred_check
    _
  $region27: #{fwd.41} parent=0 // pred_check_branch
    %114 = sbr.rel (0) target = $region29
  $region28: #{fwd.41} parent=0 // pred_region
    _
  $region29: #{fwd.41} parent=0 // pred_fallthru
    _

// kernel: fwd.44
$region0: #{fwd.44}
  #allocation0 [shape = 'u32[]', space=smem, size = 0x4, offset = 0x4, fixed_abs, tag = 'smem constant byte address 0x4 - core index']
  #allocation1 [shape = 'u32[144,128]{1,0:T(1,128)}', space=vmem, size = 0x12000, scoped, tag = 'internal scratch']
  %s0 = inlined_call_operand.vmem [shape: f32[16,32], index: 0, kind: input, shape index: {}]
  %s1 = inlined_call_operand.vmem [shape: f32[16,32], index: 1, kind: input, shape index: {}]
  %s2 = inlined_call_operand.vmem [shape: f32[1,32], index: 2, kind: input, shape index: {}]
  %s3 = inlined_call_operand.vmem [shape: f32[1,32], index: 3, kind: input, shape index: {}]
  %s4 = inlined_call_operand.vmem [shape: f32[16,32], index: 4, kind: output, shape index: {}]
  %s5 = sld [smem:[#allocation0]]
  $region26: #{fwd.44} parent=0
    _
  %s7 = ssub.s32 1, %s5
  %s8 = scalar_select 0, %s7, %s5
  // Predicated region
  $region2: #{fwd.44} parent=0 // pred_check
    _
  $region3: #{fwd.44} parent=0 // pred_check_branch
    %10 = sbr.rel (0) target = $region5
  $region4: #{fwd.44} parent=0 // pred_region
    _
  $region5: #{fwd.44} parent=0 // pred_fallthru
    _
  // Predicated region
  $region6: #{fwd.44} parent=0 // pred_check
    _
  $region7: #{fwd.44} parent=0 // pred_check_branch
    %12 = sbr.rel (0) target = $region9
  $region8: #{fwd.44} parent=0 // pred_region
    _
  $region9: #{fwd.44} parent=0 // pred_fallthru
    _
  // Predicated region
  $region10: #{fwd.44} parent=0 // pred_check
    _
  $region11: #{fwd.44} parent=0 // pred_check_branch
    %14 = sbr.rel (0) target = $region13
  $region12: #{fwd.44} parent=0 // pred_region
    _
  $region13: #{fwd.44} parent=0 // pred_fallthru
    _
  // Predicated region
  $region14: #{fwd.44} parent=0 // pred_check
    _
  $region15: #{fwd.44} parent=0 // pred_check_branch
    %16 = sbr.rel (0) target = $region17
  $region16: #{fwd.44} parent=0 // pred_region
    _
  $region17: #{fwd.44} parent=0 // pred_fallthru
    _
  %v17 = vld [vmem:[%s0] sm:$0xff]
  %v18 = vld [vmem:[%s0 + $0x8] sm:$0xff]
  %v19 = vld [vmem:[%s1] sm:$0xff]
  %v20 = vld [vmem:[%s1 + $0x8] sm:$0xff]
  %v21 = vadd.f32 %v17, %v19
  %v22 = vadd.f32 %v18, %v20
  %vm23 = vcmask 261120
  %v24 = vsel %vm23, %v21, 0.0
  %25 = vadd.xlane.f32.xlu0 %v24
  %v26 = vpop.xlane.xlu0 %25
  %v27 = vsel %vm23, %v22, 0.0
  %28 = vadd.xlane.f32.xlu0 %v27
  %v29 = vpop.xlane.xlu0 %28
  %v30 = vrcp.pop 32.0
  %v31 = vmul.f32 %v26, %v30
  %v32 = vmul.f32 %v29, %v30
  %v33 = vsub.f32 %v21, %v31
  %v34 = vsub.f32 %v22, %v32
  %v35 = vmul.f32 %v33, %v33
  %v36 = vmul.f32 %v34, %v34
  %v37 = vsel %vm23, %v35, 0.0
  %38 = vadd.xlane.f32.xlu0 %v37
  %v39 = vpop.xlane.xlu0 %38
  %v40 = vsel %vm23, %v36, 0.0
  %41 = vadd.xlane.f32.xlu0 %v40
  %v42 = vpop.xlane.xlu0 %41
  %v43 = vmul.f32 %v39, %v30
  %v44 = vmul.f32 %v42, %v30
  %v45 = vadd.f32 %v43, 1e-05
  %v46 = vadd.f32 %v44, 1e-05
  %v47 = vrsqrt.pop %v45
  %v48 = vrsqrt.pop %v46
  %v49 = vmul.f32 %v33, %v47
  %v50 = vmul.f32 %v34, %v48
  %v51 = vld [vmem:[%s2] sm:$0x1]
  %v53 = vlaneseq
  %v54 = vshrl.u32 %v53, 7
  %v55 = vsub.s32 0, %v54
  %v56 = vrot.slane %v51, %v55
  %v58 = vmul.f32 %v49, %v56
  %v59 = vmul.f32 %v50, %v56
  %v60 = vld [vmem:[%s3] sm:$0x1]
  %v62 = vlaneseq
  %v63 = vshrl.u32 %v62, 7
  %v64 = vsub.s32 0, %v63
  %v65 = vrot.slane %v60, %v64
  %v67 = vadd.f32 %v58, %v65
  %v68 = vadd.f32 %v59, %v65
  %69 = vst.msk [vmem:[%s4] sm:$0xff] %vm23, %v67
  %70 = vst.msk [vmem:[%s4 + $0x8] sm:$0xff] %vm23, %v68
  // Predicated region
  $region18: #{fwd.44} parent=0 // pred_check
    _
  $region19: #{fwd.44} parent=0 // pred_check_branch
    %72 = sbr.rel (0) target = $region21
  $region20: #{fwd.44} parent=0 // pred_region
    _
  $region21: #{fwd.44} parent=0 // pred_fallthru
    _
  // Predicated region
  $region22: #{fwd.44} parent=0 // pred_check
    _
  $region23: #{fwd.44} parent=0 // pred_check_branch
    %74 = sbr.rel (0) target = $region25
  $region24: #{fwd.44} parent=0 // pred_region
    _
  $region25: #{fwd.44} parent=0 // pred_fallthru
    _

// kernel: fwd.42
$region0: #{fwd.42}
  #allocation0 [shape = 'u32[]', space=smem, size = 0x4, offset = 0x4, fixed_abs, tag = 'smem constant byte address 0x4 - core index']
  #allocation1 [shape = 'u32[144,128]{1,0:T(1,128)}', space=vmem, size = 0x12000, scoped, tag = 'internal scratch']
  %s0 = inlined_call_operand.vmem [shape: f32[2,8,32], index: 0, kind: input, shape index: {}]
  %s1 = inlined_call_operand.vmem [shape: f32[2,8,32], index: 1, kind: input, shape index: {}]
  %s2 = inlined_call_operand.vmem [shape: f32[2,8,32], index: 2, kind: input, shape index: {}]
  %s3 = inlined_call_operand.vmem [shape: f32[2,8,8], index: 3, kind: input, shape index: {}]
  %s4 = inlined_call_operand.vmem [shape: f32[2,8,32], index: 4, kind: output, shape index: {}]
  %s5 = sld [smem:[#allocation0]]
  $region49: #{fwd.42} parent=0
    _
  %s7 = ssub.s32 1, %s5
  %s8 = scalar_select 0, %s7, %s5
  loop: start=0, step=1, limit=4
  $region2: #{fwd.42} parent=0 // loop_pre_header
    _
  $region3: #{fwd.42} parent=0 // loop_header
    %s10 = sphi 0, %s14
    %p11 = scmp.ge.s32.totalorder %s10, 4
    %s20 = sphi 0, %s22
    %s23 = sphi 0, %s20
    %s24 = sphi 0, %s23
    %s40 = sphi 0, %s24
    %s46 = sphi 0, %s48
    %s49 = sphi 0, %s46
    %s50 = sphi 0, %s49
    %s66 = sphi 0, %s50
    %s72 = sphi 0, %s74
    %s75 = sphi 0, %s72
    %s76 = sphi 0, %s75
    %s92 = sphi 0, %s76
    %s98 = sphi 0, %s100
    %s101 = sphi 0, %s98
    %s102 = sphi 0, %s101
    %s118 = sphi 0, %s102
    %s124 = sphi 0, %s126
    %s127 = sphi 0, %s124
    %s128 = sphi 0, %s127
    %s144 = sphi 0, %s128
  $region4: #{fwd.42} parent=0 // loop_header_branch
    %13 = sbr.rel (%p11) target = $region8
  $region5: #{fwd.42} parent=0 // loop_body
    %s15 = ssub.s32 %s10, 1
    %s16 = ssub.s32 %s10, 2
    %s17 = sadd.s32 %s10, 1
    %s18 = ssub.s32 %s10, %s17
    %p19 = scmp.eq.s32.totalorder %s18, 0
    %s21 = sadd.s32 %s20, 1
    %s22 = scalar_select %p19, %s20, %s21
    %p25 = pneg %p19
    %p26 = scmp.eq.s32.totalorder %s10, 1
    %p27 = por %p25, %p26
    %p28 = scmp.ne.s32.totalorder %s20, %s23
    %p29 = scmp.eq.s32.totalorder %s10, 0
    %p30 = por %p28, %p29
    %p31 = scmp.ne.s32.totalorder %s20, %s23
    %p32 = scmp.eq.s32.totalorder %s15, 1
    %p33 = por %p31, %p32
    %p34 = scmp.ne.s32.totalorder %s23, %s24
    %p35 = scmp.eq.s32.totalorder %s15, 0
    %p36 = por %p34, %p35
    %p37 = scmp.ne.s32.totalorder %s23, %s24
    %p38 = scmp.eq.s32.totalorder %s16, 1
    %p39 = por %p37, %p38
    %p41 = scmp.ne.s32.totalorder %s24, %s40
    %p42 = scmp.eq.s32.totalorder %s16, 0
    %p43 = por %p41, %p42
    %s44 = ssub.s32 %s10, %s17
    %p45 = scmp.eq.s32.totalorder %s44, 0
    %s47 = sadd.s32 %s46, 1
    %s48 = scalar_select %p45, %s46, %s47
    %p51 = pneg %p45
    %p52 = scmp.eq.s32.totalorder %s10, 1
    %p53 = por %p51, %p52
    %p54 = scmp.ne.s32.totalorder %s46, %s49
    %p55 = scmp.eq.s32.totalorder %s10, 0
    %p56 = por %p54, %p55
    %p57 = scmp.ne.s32.totalorder %s46, %s49
    %p58 = scmp.eq.s32.totalorder %s15, 1
    %p59 = por %p57, %p58
    %p60 = scmp.ne.s32.totalorder %s49, %s50
    %p61 = scmp.eq.s32.totalorder %s15, 0
    %p62 = por %p60, %p61
    %p63 = scmp.ne.s32.totalorder %s49, %s50
    %p64 = scmp.eq.s32.totalorder %s16, 1
    %p65 = por %p63, %p64
    %p67 = scmp.ne.s32.totalorder %s50, %s66
    %p68 = scmp.eq.s32.totalorder %s16, 0
    %p69 = por %p67, %p68
    %s70 = ssub.s32 %s10, %s17
    %p71 = scmp.eq.s32.totalorder %s70, 0
    %s73 = sadd.s32 %s72, 1
    %s74 = scalar_select %p71, %s72, %s73
    %p77 = pneg %p71
    %p78 = scmp.eq.s32.totalorder %s10, 1
    %p79 = por %p77, %p78
    %p80 = scmp.ne.s32.totalorder %s72, %s75
    %p81 = scmp.eq.s32.totalorder %s10, 0
    %p82 = por %p80, %p81
    %p83 = scmp.ne.s32.totalorder %s72, %s75
    %p84 = scmp.eq.s32.totalorder %s15, 1
    %p85 = por %p83, %p84
    %p86 = scmp.ne.s32.totalorder %s75, %s76
    %p87 = scmp.eq.s32.totalorder %s15, 0
    %p88 = por %p86, %p87
    %p89 = scmp.ne.s32.totalorder %s75, %s76
    %p90 = scmp.eq.s32.totalorder %s16, 1
    %p91 = por %p89, %p90
    %p93 = scmp.ne.s32.totalorder %s76, %s92
    %p94 = scmp.eq.s32.totalorder %s16, 0
    %p95 = por %p93, %p94
    %s96 = ssub.s32 %s10, %s17
    %p97 = scmp.eq.s32.totalorder %s96, 0
    %s99 = sadd.s32 %s98, 1
    %s100 = scalar_select %p97, %s98, %s99
    %p103 = pneg %p97
    %p104 = scmp.eq.s32.totalorder %s10, 1
    %p105 = por %p103, %p104
    %p106 = scmp.ne.s32.totalorder %s98, %s101
    %p107 = scmp.eq.s32.totalorder %s10, 0
    %p108 = por %p106, %p107
    %p109 = scmp.ne.s32.totalorder %s98, %s101
    %p110 = scmp.eq.s32.totalorder %s15, 1
    %p111 = por %p109, %p110
    %p112 = scmp.ne.s32.totalorder %s101, %s102
    %p113 = scmp.eq.s32.totalorder %s15, 0
    %p114 = por %p112, %p113
    %p115 = scmp.ne.s32.totalorder %s101, %s102
    %p116 = scmp.eq.s32.totalorder %s16, 1
    %p117 = por %p115, %p116
    %p119 = scmp.ne.s32.totalorder %s102, %s118
    %p120 = scmp.eq.s32.totalorder %s16, 0
    %p121 = por %p119, %p120
    %s122 = ssub.s32 %s10, %s17
    %p123 = scmp.eq.s32.totalorder %s122, 0
    %s125 = sadd.s32 %s124, 1
    %s126 = scalar_select %p123, %s124, %s125
    %p129 = pneg %p123
    %p130 = scmp.eq.s32.totalorder %s10, 1
    %p131 = por %p129, %p130
    %p132 = scmp.ne.s32.totalorder %s124, %s127
    %p133 = scmp.eq.s32.totalorder %s10, 0
    %p134 = por %p132, %p133
    %p135 = scmp.ne.s32.totalorder %s124, %s127
    %p136 = scmp.eq.s32.totalorder %s15, 1
    %p137 = por %p135, %p136
    %p138 = scmp.ne.s32.totalorder %s127, %s128
    %p139 = scmp.eq.s32.totalorder %s15, 0
    %p140 = por %p138, %p139
    %p141 = scmp.ne.s32.totalorder %s127, %s128
    %p142 = scmp.eq.s32.totalorder %s16, 1
    %p143 = por %p141, %p142
    %p145 = scmp.ne.s32.totalorder %s128, %s144
    %p146 = scmp.eq.s32.totalorder %s16, 0
    %p147 = por %p145, %p146
    %p148 = scmp.le.s32.totalorder 1, %s10
    %p149 = scmp.lt.s32.totalorder %s10, 3
    %p150 = pnand %p148, %p149
    %p151 = pneg %p150
    // Predicated region
    $region9: #{fwd.42} parent=5 // pred_check
      _
    $region10: #{fwd.42} parent=5 // pred_check_branch
      %153 = sbr.rel (%p150) target = $region12
    $region11: #{fwd.42} parent=5 // pred_region
      %s154 = ssub.s32 %s10, 1
    $region12: #{fwd.42} parent=5 // pred_fallthru
      _
    %p155 = scmp.lt.s32.totalorder %s10, 2
    // Predicated region
    $region13: #{fwd.42} parent=5 // pred_check
      %p156 = pneg %p155
    $region14: #{fwd.42} parent=5 // pred_check_branch
      %158 = sbr.rel (%p156) target = $region16
    $region15: #{fwd.42} parent=5 // pred_region
      // Predicated region
      $region17: #{fwd.42} parent=15 // pred_check
        %p159 = pneg %p30
      $region18: #{fwd.42} parent=15 // pred_check_branch
        %161 = sbr.rel (%p159) target = $region20
      $region19: #{fwd.42} parent=15 // pred_region
        %p162 = scmp.lt.s32.totalorder %s10, 1
        %s163 = scalar_select %p162, %s10, 1
        %s164 = smul.addr %s163, 8
        %s165 = scalar_lea.vmem %s0, %s164
      $region20: #{fwd.42} parent=15 // pred_fallthru
        _
      // Predicated region
      $region21: #{fwd.42} parent=15 // pred_check
        %p166 = pneg %p56
      $region22: #{fwd.42} parent=15 // pred_check_branch
        %168 = sbr.rel (%p166) target = $region24
      $region23: #{fwd.42} parent=15 // pred_region
        %p169 = scmp.lt.s32.totalorder %s10, 1
        %s170 = scalar_select %p169, %s10, 1
        %s171 = smul.addr %s170, 8
        %s172 = scalar_lea.vmem %s1, %s171
      $region24: #{fwd.42} parent=15 // pred_fallthru
        _
      // Predicated region
      $region25: #{fwd.42} parent=15 // pred_check
        %p173 = pneg %p82
      $region26: #{fwd.42} parent=15 // pred_check_branch
        %175 = sbr.rel (%p173) target = $region28
      $region27: #{fwd.42} parent=15 // pred_region
        %p176 = scmp.lt.s32.totalorder %s10, 1
        %s177 = scalar_select %p176, %s10, 1
        %s178 = smul.addr %s177, 8
        %s179 = scalar_lea.vmem %s2, %s178
      $region28: #{fwd.42} parent=15 // pred_fallthru
        _
      // Predicated region
      $region29: #{fwd.42} parent=15 // pred_check
        %p180 = pneg %p108
      $region30: #{fwd.42} parent=15 // pred_check_branch
        %182 = sbr.rel (%p180) target = $region32
      $region31: #{fwd.42} parent=15 // pred_region
        %p183 = scmp.lt.s32.totalorder %s10, 1
        %s184 = scalar_select %p183, %s10, 1
        %s185 = smul.addr %s184, 8
        %s186 = scalar_lea.vmem %s3, %s185
      $region32: #{fwd.42} parent=15 // pred_fallthru
        _
    $region16: #{fwd.42} parent=5 // pred_fallthru
      _
    %p187 = scmp.le.s32.totalorder 1, %s10
    %p188 = scmp.lt.s32.totalorder %s10, 3
    %p189 = pnand %p187, %p188
    %p190 = pneg %p189
    // Predicated region
    $region33: #{fwd.42} parent=5 // pred_check
      _
    $region34: #{fwd.42} parent=5 // pred_check_branch
      %192 = sbr.rel (%p189) target = $region36
    $region35: #{fwd.42} parent=5 // pred_region
      %s193 = ssub.s32 %s10, 1
      %p194 = scmp.lt.s32.totalorder %s15, 1
      %s195 = scalar_select %p194, %s15, 1
      %s196 = smul.addr %s195, 8
      %s197 = scalar_lea.vmem %s0, %s196
      %p198 = pneg %p36
      %p199 = pneg %p33
      %p200 = scmp.lt.s32.totalorder %s15, 1
      %s201 = scalar_select %p200, %s15, 1
      %s202 = smul.addr %s201, 8
      %s203 = scalar_lea.vmem %s1, %s202
      %p204 = pneg %p62
      %p205 = pneg %p59
      %p206 = scmp.lt.s32.totalorder %s15, 1
      %s207 = scalar_select %p206, %s15, 1
      %s208 = smul.addr %s207, 8
      %s209 = scalar_lea.vmem %s2, %s208
      %p210 = pneg %p88
      %p211 = pneg %p85
      %p212 = scmp.lt.s32.totalorder %s15, 1
      %s213 = scalar_select %p212, %s15, 1
      %s214 = smul.addr %s213, 8
      %s215 = scalar_lea.vmem %s3, %s214
      %p216 = pneg %p114
      %p217 = pneg %p111
      %p218 = pneg %p140
      %p219 = pneg %p137
      %p220 = scmp.lt.s32.totalorder %s15, 1
      %s221 = scalar_select %p220, %s15, 1
      %s222 = smul.addr %s221, 8
      %s223 = scalar_lea.vmem %s4, %s222
      %p224 = scmp.lt.s32.totalorder %s15, 1
      %s225 = scalar_select %p224, %s15, 1
      %s226 = smul.addr %s225, 8
      %s227 = scalar_lea.vmem %s0, %s226
      %p228 = scmp.lt.s32.totalorder %s15, 1
      %s229 = scalar_select %p228, %s15, 1
      %s230 = smul.addr %s229, 8
      %s231 = scalar_lea.vmem %s1, %s230
      %p232 = scmp.lt.s32.totalorder %s15, 1
      %s233 = scalar_select %p232, %s15, 1
      %s234 = smul.addr %s233, 8
      %s235 = scalar_lea.vmem %s2, %s234
      %p236 = scmp.lt.s32.totalorder %s15, 1
      %s237 = scalar_select %p236, %s15, 1
      %s238 = smul.addr %s237, 8
      %s239 = scalar_lea.vmem %s3, %s238
      %p240 = scmp.lt.s32.totalorder %s15, 1
      %s241 = scalar_select %p240, %s15, 1
      %s242 = smul.addr %s241, 8
      %s243 = scalar_lea.vmem %s4, %s242
      %v245 = vld [vmem:[%s227] sm:$0xff]
      %v246 = vld [vmem:[%s231] sm:$0xff]
      %v247 = vld [vmem:[%s235] sm:$0xff]
      %v248 = vld [vmem:[%s239] sm:$0xff]
      %vm249 = vcmp.ne.f32.partialorder %v248, 0.0
      %v250 = vpack.c.bf16 %v245, %v245
      %v251 = vpack.c.bf16 %v246, %v246
      %v252 = vpack.c.bf16 %v247, %v247
      %vm253 = vcmask 64512
      %v255 = vsel %vm253, %v250, 0
      %v258 = vsel %vm253, %v251, 0
      %260 = vmatprep.subr.bf16.mxu0 0
      %261 = vmatpush1.bf16.xpose.msra.mxu0 %v258
      %262 = vmatprep.subr.bf16.mxu0 0
      %263 = vmatpush1.bf16.xpose.msra.mxu0 0
      %264 = vmatprep.subr.bf16.mxu0 0
      %265 = vmatpush1.bf16.xpose.msra.mxu0 0
      %266 = vmatprep.subr.bf16.mxu0 0
      %267 = vmatpush1.bf16.xpose.msra.mxu0 0
      %268 = vmatprep.subr.bf16.mxu0 0
      %269 = vmatpush1.bf16.xpose.msra.mxu0 0
      %270 = vmatprep.subr.bf16.mxu0 0
      %271 = vmatpush1.bf16.xpose.msra.mxu0 0
      %272 = vmatprep.subr.bf16.mxu0 0
      %273 = vmatpush1.bf16.xpose.msra.mxu0 0
      %274 = vmatprep.subr.bf16.mxu0 0
      %275 = vmatpush1.bf16.xpose.msra.mxu0 0
      %276 = vmatprep.subr.bf16.mxu0 0
      %277 = vmatpush1.bf16.xpose.msra.mxu0 0
      %278 = vmatprep.subr.bf16.mxu0 0
      %279 = vmatpush1.bf16.xpose.msra.mxu0 0
      %280 = vmatprep.subr.bf16.mxu0 0
      %281 = vmatpush1.bf16.xpose.msra.mxu0 0
      %282 = vmatprep.subr.bf16.mxu0 0
      %283 = vmatpush1.bf16.xpose.msra.mxu0 0
      %284 = vmatprep.subr.bf16.mxu0 0
      %285 = vmatpush1.bf16.xpose.msra.mxu0 0
      %286 = vmatprep.subr.bf16.mxu0 0
      %287 = vmatpush1.bf16.xpose.msra.mxu0 0
      %288 = vmatprep.subr.bf16.mxu0 0
      %289 = vmatpush1.bf16.xpose.msra.mxu0 0
      %290 = vmatprep.subr.bf16.mxu0 0
      %291 = vmatpush1.bf16.xpose.msra.mxu0 0
      %292 = vmatprep.mubr.bf16.mxu0 0
      %293 = vmatmul.mubr.bf16.gmra.mrb[0].mxu0 %v255
      %v294 = vpop.f32.mrb[0].mxu0
      %v295 = vadd.f32 0.0, %v294
      %v296 = vpop.f32.mrb[0].mxu0
      %v297 = vpop.f32.mrb[0].mxu0
      %v298 = vpop.f32.mrb[0].mxu0
      %299 = vdwg.mxu0
      %v300 = vmul.f32 %v295, 0.35355338
      %v301 = vsel %vm249, %v300, -1e+09
      %v302 = vsel %vm253, %v301, -inf
      %303 = vmax.xlane.f32.xlu0 %v302
      %v304 = vpop.xlane.xlu0 %303
      %v305 = vsub.f32 %v301, %v304
      %v306 = vmul.f32 %v305, 1.442695
      %v307 = vpow.pop %v306
      %v308 = vsel %vm253, %v307, 0.0
      %309 = vadd.xlane.f32.xlu0 %v308
      %v310 = vpop.xlane.xlu0 %309
      %v311 = vrcp.pop %v310
      %v312 = vmul.f32 %v307, %v311
      %v313 = vpack.c.bf16 %v312, %v312
      %v315 = vsel %vm253, %v313, 0
      %vm317 = vcmask 1043456
      %v319 = vsel %vm317, %v252, 0
      %321 = vmatprep.subr.bf16.mxu0 0
      %322 = vmatpush1.bf16.msra.mxu0 %v319
      %323 = vmatprep.subr.bf16.mxu0 0
      %324 = vmatpush1.bf16.msra.mxu0 0
      %325 = vmatprep.subr.bf16.mxu0 0
      %326 = vmatpush1.bf16.msra.mxu0 0
      %327 = vmatprep.subr.bf16.mxu0 0
      %328 = vmatpush1.bf16.msra.mxu0 0
      %329 = vmatprep.subr.bf16.mxu0 0
      %330 = vmatpush1.bf16.msra.mxu0 0
      %331 = vmatprep.subr.bf16.mxu0 0
      %332 = vmatpush1.bf16.msra.mxu0 0
      %333 = vmatprep.subr.bf16.mxu0 0
      %334 = vmatpush1.bf16.msra.mxu0 0
      %335 = vmatprep.subr.bf16.mxu0 0
      %336 = vmatpush1.bf16.msra.mxu0 0
      %337 = vmatprep.subr.bf16.mxu0 0
      %338 = vmatpush1.bf16.msra.mxu0 0
      %339 = vmatprep.subr.bf16.mxu0 0
      %340 = vmatpush1.bf16.msra.mxu0 0
      %341 = vmatprep.subr.bf16.mxu0 0
      %342 = vmatpush1.bf16.msra.mxu0 0
      %343 = vmatprep.subr.bf16.mxu0 0
      %344 = vmatpush1.bf16.msra.mxu0 0
      %345 = vmatprep.subr.bf16.mxu0 0
      %346 = vmatpush1.bf16.msra.mxu0 0
      %347 = vmatprep.subr.bf16.mxu0 0
      %348 = vmatpush1.bf16.msra.mxu0 0
      %349 = vmatprep.subr.bf16.mxu0 0
      %350 = vmatpush1.bf16.msra.mxu0 0
      %351 = vmatprep.subr.bf16.mxu0 0
      %352 = vmatpush1.bf16.msra.mxu0 0
      %353 = vmatprep.mubr.bf16.mxu0 0
      %354 = vmatmul.mubr.bf16.gmra.mrb[0].mxu0 %v315
      %v355 = vpop.f32.mrb[0].mxu0
      %v356 = vadd.f32 0.0, %v355
      %v357 = vpop.f32.mrb[0].mxu0
      %v358 = vpop.f32.mrb[0].mxu0
      %v359 = vpop.f32.mrb[0].mxu0
      %360 = vdwg.mxu0
      %362 = vrot.lane.b32.xlu0 %v250, 120
      %v363 = vpop.permute.xlu0 %362
      %365 = vrot.lane.b32.xlu0 %v251, 120
      %v366 = vpop.permute.xlu0 %365
      %v368 = vsel %vm253, %v363, 0
      %v371 = vsel %vm253, %v366, 0
      %373 = vmatprep.subr.bf16.mxu0 0
      %374 = vmatpush1.bf16.xpose.msra.mxu0 %v371
      %375 = vmatprep.subr.bf16.mxu0 0
      %376 = vmatpush1.bf16.xpose.msra.mxu0 0
      %377 = vmatprep.subr.bf16.mxu0 0
      %378 = vmatpush1.bf16.xpose.msra.mxu0 0
      %379 = vmatprep.subr.bf16.mxu0 0
      %380 = vmatpush1.bf16.xpose.msra.mxu0 0
      %381 = vmatprep.subr.bf16.mxu0 0
      %382 = vmatpush1.bf16.xpose.msra.mxu0 0
      %383 = vmatprep.subr.bf16.mxu0 0
      %384 = vmatpush1.bf16.xpose.msra.mxu0 0
      %385 = vmatprep.subr.bf16.mxu0 0
      %386 = vmatpush1.bf16.xpose.msra.mxu0 0
      %387 = vmatprep.subr.bf16.mxu0 0
      %388 = vmatpush1.bf16.xpose.msra.mxu0 0
      %389 = vmatprep.subr.bf16.mxu0 0
      %390 = vmatpush1.bf16.xpose.msra.mxu0 0
      %391 = vmatprep.subr.bf16.mxu0 0
      %392 = vmatpush1.bf16.xpose.msra.mxu0 0
      %393 = vmatprep.subr.bf16.mxu0 0
      %394 = vmatpush1.bf16.xpose.msra.mxu0 0
      %395 = vmatprep.subr.bf16.mxu0 0
      %396 = vmatpush1.bf16.xpose.msra.mxu0 0
      %397 = vmatprep.subr.bf16.mxu0 0
      %398 = vmatpush1.bf16.xpose.msra.mxu0 0
      %399 = vmatprep.subr.bf16.mxu0 0
      %400 = vmatpush1.bf16.xpose.msra.mxu0 0
      %401 = vmatprep.subr.bf16.mxu0 0
      %402 = vmatpush1.bf16.xpose.msra.mxu0 0
      %403 = vmatprep.subr.bf16.mxu0 0
      %404 = vmatpush1.bf16.xpose.msra.mxu0 0
      %405 = vmatprep.mubr.bf16.mxu0 0
      %406 = vmatmul.mubr.bf16.gmra.mrb[0].mxu0 %v368
      %v407 = vpop.f32.mrb[0].mxu0
      %v408 = vadd.f32 0.0, %v407
      %v409 = vpop.f32.mrb[0].mxu0
      %v410 = vpop.f32.mrb[0].mxu0
      %v411 = vpop.f32.mrb[0].mxu0
      %412 = vdwg.mxu0
      %v413 = vmul.f32 %v408, 0.35355338
      %v414 = vsel %vm249, %v413, -1e+09
      %v415 = vsel %vm253, %v414, -inf
      %416 = vmax.xlane.f32.xlu0 %v415
      %v417 = vpop.xlane.xlu0 %416
      %v418 = vsub.f32 %v414, %v417
      %v419 = vmul.f32 %v418, 1.442695
      %v420 = vpow.pop %v419
      %v421 = vsel %vm253, %v420, 0.0
      %422 = vadd.xlane.f32.xlu0 %v421
      %v423 = vpop.xlane.xlu0 %422
      %v424 = vrcp.pop %v423
      %v425 = vmul.f32 %v420, %v424
      %v426 = vpack.c.bf16 %v425, %v425
      %428 = vrot.lane.b32.xlu0 %v252, 120
      %v429 = vpop.permute.xlu0 %428
      %v431 = vsel %vm253, %v426, 0
      %v434 = vsel %vm317, %v429, 0
      %436 = vmatprep.subr.bf16.mxu0 0
      %437 = vmatpush1.bf16.msra.mxu0 %v434
      %438 = vmatprep.subr.bf16.mxu0 0
      %439 = vmatpush1.bf16.msra.mxu0 0
      %440 = vmatprep.subr.bf16.mxu0 0
      %441 = vmatpush1.bf16.msra.mxu0 0
      %442 = vmatprep.subr.bf16.mxu0 0
      %443 = vmatpush1.bf16.msra.mxu0 0
      %444 = vmatprep.subr.bf16.mxu0 0
      %445 = vmatpush1.bf16.msra.mxu0 0
      %446 = vmatprep.subr.bf16.mxu0 0
      %447 = vmatpush1.bf16.msra.mxu0 0
      %448 = vmatprep.subr.bf16.mxu0 0
      %449 = vmatpush1.bf16.msra.mxu0 0
      %450 = vmatprep.subr.bf16.mxu0 0
      %451 = vmatpush1.bf16.msra.mxu0 0
      %452 = vmatprep.subr.bf16.mxu0 0
      %453 = vmatpush1.bf16.msra.mxu0 0
      %454 = vmatprep.subr.bf16.mxu0 0
      %455 = vmatpush1.bf16.msra.mxu0 0
      %456 = vmatprep.subr.bf16.mxu0 0
      %457 = vmatpush1.bf16.msra.mxu0 0
      %458 = vmatprep.subr.bf16.mxu0 0
      %459 = vmatpush1.bf16.msra.mxu0 0
      %460 = vmatprep.subr.bf16.mxu0 0
      %461 = vmatpush1.bf16.msra.mxu0 0
      %462 = vmatprep.subr.bf16.mxu0 0
      %463 = vmatpush1.bf16.msra.mxu0 0
      %464 = vmatprep.subr.bf16.mxu0 0
      %465 = vmatpush1.bf16.msra.mxu0 0
      %466 = vmatprep.subr.bf16.mxu0 0
      %467 = vmatpush1.bf16.msra.mxu0 0
      %468 = vmatprep.mubr.bf16.mxu0 0
      %469 = vmatmul.mubr.bf16.gmra.mrb[0].mxu0 %v431
      %v470 = vpop.f32.mrb[0].mxu0
      %v471 = vadd.f32 0.0, %v470
      %v472 = vpop.f32.mrb[0].mxu0
      %v473 = vpop.f32.mrb[0].mxu0
      %v474 = vpop.f32.mrb[0].mxu0
      %475 = vdwg.mxu0
      %476 = vrot.lane.b32.xlu0 %v250, 112
      %v477 = vpop.permute.xlu0 %476
      %478 = vrot.lane.b32.xlu0 %v251, 112
      %v479 = vpop.permute.xlu0 %478
      %v481 = vsel %vm253, %v477, 0
      %v484 = vsel %vm253, %v479, 0
      %486 = vmatprep.subr.bf16.mxu0 0
      %487 = vmatpush1.bf16.xpose.msra.mxu0 %v484
      %488 = vmatprep.subr.bf16.mxu0 0
      %489 = vmatpush1.bf16.xpose.msra.mxu0 0
      %490 = vmatprep.subr.bf16.mxu0 0
      %491 = vmatpush1.bf16.xpose.msra.mxu0 0
      %492 = vmatprep.subr.bf16.mxu0 0
      %493 = vmatpush1.bf16.xpose.msra.mxu0 0
      %494 = vmatprep.subr.bf16.mxu0 0
      %495 = vmatpush1.bf16.xpose.msra.mxu0 0
      %496 = vmatprep.subr.bf16.mxu0 0
      %497 = vmatpush1.bf16.xpose.msra.mxu0 0
      %498 = vmatprep.subr.bf16.mxu0 0
      %499 = vmatpush1.bf16.xpose.msra.mxu0 0
      %500 = vmatprep.subr.bf16.mxu0 0
      %501 = vmatpush1.bf16.xpose.msra.mxu0 0
      %502 = vmatprep.subr.bf16.mxu0 0
      %503 = vmatpush1.bf16.xpose.msra.mxu0 0
      %504 = vmatprep.subr.bf16.mxu0 0
      %505 = vmatpush1.bf16.xpose.msra.mxu0 0
      %506 = vmatprep.subr.bf16.mxu0 0
      %507 = vmatpush1.bf16.xpose.msra.mxu0 0
      %508 = vmatprep.subr.bf16.mxu0 0
      %509 = vmatpush1.bf16.xpose.msra.mxu0 0
      %510 = vmatprep.subr.bf16.mxu0 0
      %511 = vmatpush1.bf16.xpose.msra.mxu0 0
      %512 = vmatprep.subr.bf16.mxu0 0
      %513 = vmatpush1.bf16.xpose.msra.mxu0 0
      %514 = vmatprep.subr.bf16.mxu0 0
      %515 = vmatpush1.bf16.xpose.msra.mxu0 0
      %516 = vmatprep.subr.bf16.mxu0 0
      %517 = vmatpush1.bf16.xpose.msra.mxu0 0
      %518 = vmatprep.mubr.bf16.mxu0 0
      %519 = vmatmul.mubr.bf16.gmra.mrb[0].mxu0 %v481
      %v520 = vpop.f32.mrb[0].mxu0
      %v521 = vadd.f32 0.0, %v520
      %v522 = vpop.f32.mrb[0].mxu0
      %v523 = vpop.f32.mrb[0].mxu0
      %v524 = vpop.f32.mrb[0].mxu0
      %525 = vdwg.mxu0
      %v526 = vmul.f32 %v521, 0.35355338
      %v527 = vsel %vm249, %v526, -1e+09
      %v528 = vsel %vm253, %v527, -inf
      %529 = vmax.xlane.f32.xlu0 %v528
      %v530 = vpop.xlane.xlu0 %529
      %v531 = vsub.f32 %v527, %v530
      %v532 = vmul.f32 %v531, 1.442695
      %v533 = vpow.pop %v532
      %v534 = vsel %vm253, %v533, 0.0
      %535 = vadd.xlane.f32.xlu0 %v534
      %v536 = vpop.xlane.xlu0 %535
      %v537 = vrcp.pop %v536
      %v538 = vmul.f32 %v533, %v537
      %v539 = vpack.c.bf16 %v538, %v538
      %540 = vrot.lane.b32.xlu0 %v252, 112
      %v541 = vpop.permute.xlu0 %540
      %v543 = vsel %vm253, %v539, 0
      %v546 = vsel %vm317, %v541, 0
      %548 = vmatprep.subr.bf16.mxu0 0
      %549 = vmatpush1.bf16.msra.mxu0 %v546
      %550 = vmatprep.subr.bf16.mxu0 0
      %551 = vmatpush1.bf16.msra.mxu0 0
      %552 = vmatprep.subr.bf16.mxu0 0
      %553 = vmatpush1.bf16.msra.mxu0 0
      %554 = vmatprep.subr.bf16.mxu0 0
      %555 = vmatpush1.bf16.msra.mxu0 0
      %556 = vmatprep.subr.bf16.mxu0 0
      %557 = vmatpush1.bf16.msra.mxu0 0
      %558 = vmatprep.subr.bf16.mxu0 0
      %559 = vmatpush1.bf16.msra.mxu0 0
      %560 = vmatprep.subr.bf16.mxu0 0
      %561 = vmatpush1.bf16.msra.mxu0 0
      %562 = vmatprep.subr.bf16.mxu0 0
      %563 = vmatpush1.bf16.msra.mxu0 0
      %564 = vmatprep.subr.bf16.mxu0 0
      %565 = vmatpush1.bf16.msra.mxu0 0
      %566 = vmatprep.subr.bf16.mxu0 0
      %567 = vmatpush1.bf16.msra.mxu0 0
      %568 = vmatprep.subr.bf16.mxu0 0
      %569 = vmatpush1.bf16.msra.mxu0 0
      %570 = vmatprep.subr.bf16.mxu0 0
      %571 = vmatpush1.bf16.msra.mxu0 0
      %572 = vmatprep.subr.bf16.mxu0 0
      %573 = vmatpush1.bf16.msra.mxu0 0
      %574 = vmatprep.subr.bf16.mxu0 0
      %575 = vmatpush1.bf16.msra.mxu0 0
      %576 = vmatprep.subr.bf16.mxu0 0
      %577 = vmatpush1.bf16.msra.mxu0 0
      %578 = vmatprep.subr.bf16.mxu0 0
      %579 = vmatpush1.bf16.msra.mxu0 0
      %580 = vmatprep.mubr.bf16.mxu0 0
      %581 = vmatmul.mubr.bf16.gmra.mrb[0].mxu0 %v543
      %v582 = vpop.f32.mrb[0].mxu0
      %v583 = vadd.f32 0.0, %v582
      %v584 = vpop.f32.mrb[0].mxu0
      %v585 = vpop.f32.mrb[0].mxu0
      %v586 = vpop.f32.mrb[0].mxu0
      %587 = vdwg.mxu0
      %588 = vrot.lane.b32.xlu0 %v250, 104
      %v589 = vpop.permute.xlu0 %588
      %590 = vrot.lane.b32.xlu0 %v251, 104
      %v591 = vpop.permute.xlu0 %590
      %v593 = vsel %vm253, %v589, 0
      %v596 = vsel %vm253, %v591, 0
      %598 = vmatprep.subr.bf16.mxu0 0
      %599 = vmatpush1.bf16.xpose.msra.mxu0 %v596
      %600 = vmatprep.subr.bf16.mxu0 0
      %601 = vmatpush1.bf16.xpose.msra.mxu0 0
      %602 = vmatprep.subr.bf16.mxu0 0
      %603 = vmatpush1.bf16.xpose.msra.mxu0 0
      %604 = vmatprep.subr.bf16.mxu0 0
      %605 = vmatpush1.bf16.xpose.msra.mxu0 0
      %606 = vmatprep.subr.bf16.mxu0 0
      %607 = vmatpush1.bf16.xpose.msra.mxu0 0
      %608 = vmatprep.subr.bf16.mxu0 0
      %609 = vmatpush1.bf16.xpose.msra.mxu0 0
      %610 = vmatprep.subr.bf16.mxu0 0
      %611 = vmatpush1.bf16.xpose.msra.mxu0 0
      %612 = vmatprep.subr.bf16.mxu0 0
      %613 = vmatpush1.bf16.xpose.msra.mxu0 0
      %614 = vmatprep.subr.bf16.mxu0 0
      %615 = vmatpush1.bf16.xpose.msra.mxu0 0
      %616 = vmatprep.subr.bf16.mxu0 0
      %617 = vmatpush1.bf16.xpose.msra.mxu0 0
      %618 = vmatprep.subr.bf16.mxu0 0
      %619 = vmatpush1.bf16.xpose.msra.mxu0 0
      %620 = vmatprep.subr.bf16.mxu0 0
      %621 = vmatpush1.bf16.xpose.msra.mxu0 0
      %622 = vmatprep.subr.bf16.mxu0 0
      %623 = vmatpush1.bf16.xpose.msra.mxu0 0
      %624 = vmatprep.subr.bf16.mxu0 0
      %625 = vmatpush1.bf16.xpose.msra.mxu0 0
      %626 = vmatprep.subr.bf16.mxu0 0
      %627 = vmatpush1.bf16.xpose.msra.mxu0 0
      %628 = vmatprep.subr.bf16.mxu0 0
      %629 = vmatpush1.bf16.xpose.msra.mxu0 0
      %630 = vmatprep.mubr.bf16.mxu0 0
      %631 = vmatmul.mubr.bf16.gmra.mrb[0].mxu0 %v593
      %v632 = vpop.f32.mrb[0].mxu0
      %v633 = vadd.f32 0.0, %v632
      %v634 = vpop.f32.mrb[0].mxu0
      %v635 = vpop.f32.mrb[0].mxu0
      %v636 = vpop.f32.mrb[0].mxu0
      %637 = vdwg.mxu0
      %v638 = vmul.f32 %v633, 0.35355338
      %v639 = vsel %vm249, %v638, -1e+09
      %v640 = vsel %vm253, %v639, -inf
      %641 = vmax.xlane.f32.xlu0 %v640
      %v642 = vpop.xlane.xlu0 %641
      %v643 = vsub.f32 %v639, %v642
      %v644 = vmul.f32 %v643, 1.442695
      %v645 = vpow.pop %v644
      %v646 = vsel %vm253, %v645, 0.0
      %647 = vadd.xlane.f32.xlu0 %v646
      %v648 = vpop.xlane.xlu0 %647
      %v649 = vrcp.pop %v648
      %v650 = vmul.f32 %v645, %v649
      %v651 = vpack.c.bf16 %v650, %v650
      %652 = vrot.lane.b32.xlu0 %v252, 104
      %v653 = vpop.permute.xlu0 %652
      %v655 = vsel %vm253, %v651, 0
      %v658 = vsel %vm317, %v653, 0
      %660 = vmatprep.subr.bf16.mxu0 0
      %661 = vmatpush1.bf16.msra.mxu0 %v658
      %662 = vmatprep.subr.bf16.mxu0 0
      %663 = vmatpush1.bf16.msra.mxu0 0
      %664 = vmatprep.subr.bf16.mxu0 0
      %665 = vmatpush1.bf16.msra.mxu0 0
      %666 = vmatprep.subr.bf16.mxu0 0
      %667 = vmatpush1.bf16.msra.mxu0 0
      %668 = vmatprep.subr.bf16.mxu0 0
      %669 = vmatpush1.bf16.msra.mxu0 0
      %670 = vmatprep.subr.bf16.mxu0 0
      %671 = vmatpush1.bf16.msra.mxu0 0
      %672 = vmatprep.subr.bf16.mxu0 0
      %673 = vmatpush1.bf16.msra.mxu0 0
      %674 = vmatprep.subr.bf16.mxu0 0
      %675 = vmatpush1.bf16.msra.mxu0 0
      %676 = vmatprep.subr.bf16.mxu0 0
      %677 = vmatpush1.bf16.msra.mxu0 0
      %678 = vmatprep.subr.bf16.mxu0 0
      %679 = vmatpush1.bf16.msra.mxu0 0
      %680 = vmatprep.subr.bf16.mxu0 0
      %681 = vmatpush1.bf16.msra.mxu0 0
      %682 = vmatprep.subr.bf16.mxu0 0
      %683 = vmatpush1.bf16.msra.mxu0 0
      %684 = vmatprep.subr.bf16.mxu0 0
      %685 = vmatpush1.bf16.msra.mxu0 0
      %686 = vmatprep.subr.bf16.mxu0 0
      %687 = vmatpush1.bf16.msra.mxu0 0
      %688 = vmatprep.subr.bf16.mxu0 0
      %689 = vmatpush1.bf16.msra.mxu0 0
      %690 = vmatprep.subr.bf16.mxu0 0
      %691 = vmatpush1.bf16.msra.mxu0 0
      %692 = vmatprep.mubr.bf16.mxu0 0
      %693 = vmatmul.mubr.bf16.gmra.mrb[0].mxu0 %v655
      %v694 = vpop.f32.mrb[0].mxu0
      %v695 = vadd.f32 0.0, %v694
      %v696 = vpop.f32.mrb[0].mxu0
      %v697 = vpop.f32.mrb[0].mxu0
      %v698 = vpop.f32.mrb[0].mxu0
      %699 = vdwg.mxu0
      %701 = vrot.lane.b32.xlu0 %v471, 8
      %v702 = vpop.permute.xlu0 %701
      %705 = vrot.lane.b32.xlu0 %v583, 16
      %v706 = vpop.permute.xlu0 %705
      %709 = vrot.lane.b32.xlu0 %v695, 24
      %v710 = vpop.permute.xlu0 %709
      %v712 = vsel %vm253, %v356, %v702
      %vm713 = vcmask 130048
      %v714 = vsel %vm713, %v712, %v706
      %vm715 = vcmask 195584
      %v716 = vsel %vm715, %v714, %v710
      %vm717 = vcmask 261120
      %718 = vst.msk [vmem:[%s243] sm:$0xff] %vm717, %v716
      %p719 = scmp.lt.s32.totalorder %s15, 1
      %s720 = scalar_select %p719, %s15, 1
      %s721 = smul.addr %s720, 8
      %s722 = scalar_lea.vmem %s4, %s721
      // Predicated region
      $region37: #{fwd.42} parent=35 // pred_check
        %p723 = pneg %p137
      $region38: #{fwd.42} parent=35 // pred_check_branch
        %725 = sbr.rel (%p723) target = $region40
      $region39: #{fwd.42} parent=35 // pred_region
        _
      $region40: #{fwd.42} parent=35 // pred_fallthru
        _
    $region36: #{fwd.42} parent=5 // pred_fallthru
      _
    %p726 = scmp.le.s32.totalorder 2, %s10
    // Predicated region
    $region41: #{fwd.42} parent=5 // pred_check
      %p727 = pneg %p726
    $region42: #{fwd.42} parent=5 // pred_check_branch
      %729 = sbr.rel (%p727) target = $region44
    $region43: #{fwd.42} parent=5 // pred_region
      %s730 = ssub.s32 %s10, 2
      // Predicated region
      $region45: #{fwd.42} parent=43 // pred_check
        %p731 = pneg %p143
      $region46: #{fwd.42} parent=43 // pred_check_branch
        %733 = sbr.rel (%p731) target = $region48
      $region47: #{fwd.42} parent=43 // pred_region
        %p734 = scmp.lt.s32.totalorder %s16, 1
        %s735 = scalar_select %p734, %s16, 1
        %s736 = smul.addr %s735, 8
        %s737 = scalar_lea.vmem %s4, %s736
      $region48: #{fwd.42} parent=43 // pred_fallthru
        _
    $region44: #{fwd.42} parent=5 // pred_fallthru
      _
  $region6: #{fwd.42} parent=0 // loop_footer
    %s14 = sadd.s32 1, %s10
  $region7: #{fwd.42} parent=0 // loop_footer_branch
    %9 = sbr.rel target = $region3
  $region8: #{fwd.42} parent=0 // loop_exit
    _

// kernel: fwd.45
$region0: #{fwd.45}
  #allocation0 [shape = 'u32[]', space=smem, size = 0x4, offset = 0x4, fixed_abs, tag = 'smem constant byte address 0x4 - core index']
  #allocation1 [shape = 'u32[144,128]{1,0:T(1,128)}', space=vmem, size = 0x12000, scoped, tag = 'internal scratch']
  #allocation2 [shape = 'f32[16,128]{1,0:T(8,128)}', space=vmem, size = 0x2000, scoped, tag = 'scratch operand']
  %s0 = inlined_call_operand.vmem [shape: f32[16,128], index: 0, kind: input, shape index: {}]
  %s1 = inlined_call_operand.vmem [shape: f32[128,128], index: 1, kind: input, shape index: {}]
  %s2 = inlined_call_operand.vmem [shape: f32[1,128], index: 2, kind: input, shape index: {}]
  %s3 = inlined_call_operand.vmem [shape: f32[16,128], index: 3, kind: output, shape index: {}]
  %s4 = sld [smem:[#allocation0]]
  $region30: #{fwd.45} parent=0
    _
  %s6 = ssub.s32 1, %s4
  %s7 = scalar_select 0, %s6, %s4
  // Predicated region
  $region2: #{fwd.45} parent=0 // pred_check
    _
  $region3: #{fwd.45} parent=0 // pred_check_branch
    %9 = sbr.rel (0) target = $region5
  $region4: #{fwd.45} parent=0 // pred_region
    _
  $region5: #{fwd.45} parent=0 // pred_fallthru
    _
  // Predicated region
  $region6: #{fwd.45} parent=0 // pred_check
    _
  $region7: #{fwd.45} parent=0 // pred_check_branch
    %11 = sbr.rel (0) target = $region9
  $region8: #{fwd.45} parent=0 // pred_region
    _
  $region9: #{fwd.45} parent=0 // pred_fallthru
    _
  // Predicated region
  $region10: #{fwd.45} parent=0 // pred_check
    _
  $region11: #{fwd.45} parent=0 // pred_check_branch
    %13 = sbr.rel (0) target = $region13
  $region12: #{fwd.45} parent=0 // pred_region
    _
  $region13: #{fwd.45} parent=0 // pred_fallthru
    _
  %p15 = scmp.eq.s32.totalorder 0, 0
  // Predicated region
  $region14: #{fwd.45} parent=0 // pred_check
    %p16 = pneg %p15
  $region15: #{fwd.45} parent=0 // pred_check_branch
    %18 = sbr.rel (%p16) target = $region17
  $region16: #{fwd.45} parent=0 // pred_region
    %19 = vst [vmem:[#allocation2] sm:$0xff] 0.0
    %20 = vst [vmem:[#allocation2 + $0x8] sm:$0xff] 0.0
  $region17: #{fwd.45} parent=0 // pred_fallthru
    _
  %v21 = vld [vmem:[#allocation2] sm:$0xff]
  %v22 = vld [vmem:[#allocation2 + $0x8] sm:$0xff]
  %v23 = vld [vmem:[%s0] sm:$0xff]
  %v24 = vld [vmem:[%s0 + $0x8] sm:$0xff]
  %v25 = vpack.c.bf16 %v24, %v23
  %v26 = vld [vmem:[%s1] sm:$0xff]
  %v27 = vld [vmem:[%s1 + $0x8] sm:$0xff]
  %v28 = vld [vmem:[%s1 + $0x10] sm:$0xff]
  %v29 = vld [vmem:[%s1 + $0x18] sm:$0xff]
  %v30 = vld [vmem:[%s1 + $0x20] sm:$0xff]
  %v31 = vld [vmem:[%s1 + $0x28] sm:$0xff]
  %v32 = vld [vmem:[%s1 + $0x30] sm:$0xff]
  %v33 = vld [vmem:[%s1 + $0x38] sm:$0xff]
  %v34 = vld [vmem:[%s1 + $0x40] sm:$0xff]
  %v35 = vld [vmem:[%s1 + $0x48] sm:$0xff]
  %v36 = vld [vmem:[%s1 + $0x50] sm:$0xff]
  %v37 = vld [vmem:[%s1 + $0x58] sm:$0xff]
  %v38 = vld [vmem:[%s1 + $0x60] sm:$0xff]
  %v39 = vld [vmem:[%s1 + $0x68] sm:$0xff]
  %v40 = vld [vmem:[%s1 + $0x70] sm:$0xff]
  %v41 = vld [vmem:[%s1 + $0x78] sm:$0xff]
  %v42 = vpack.c.bf16 %v27, %v26
  %v43 = vpack.c.bf16 %v29, %v28
  %v44 = vpack.c.bf16 %v31, %v30
  %v45 = vpack.c.bf16 %v33, %v32
  %v46 = vpack.c.bf16 %v35, %v34
  %v47 = vpack.c.bf16 %v37, %v36
  %v48 = vpack.c.bf16 %v39, %v38
  %v49 = vpack.c.bf16 %v41, %v40
  %50 = vmatprep.subr.bf16.mxu0 0
  %51 = vmatpush1.bf16.msra.mxu0 %v42
  %52 = vmatprep.subr.bf16.mxu0 0
  %53 = vmatpush1.bf16.msra.mxu0 %v43
  %54 = vmatprep.subr.bf16.mxu0 0
  %55 = vmatpush1.bf16.msra.mxu0 %v44
  %56 = vmatprep.subr.bf16.mxu0 0
  %57 = vmatpush1.bf16.msra.mxu0 %v45
  %58 = vmatprep.subr.bf16.mxu0 0
  %59 = vmatpush1.bf16.msra.mxu0 %v46
  %60 = vmatprep.subr.bf16.mxu0 0
  %61 = vmatpush1.bf16.msra.mxu0 %v47
  %62 = vmatprep.subr.bf16.mxu0 0
  %63 = vmatpush1.bf16.msra.mxu0 %v48
  %64 = vmatprep.subr.bf16.mxu0 0
  %65 = vmatpush1.bf16.msra.mxu0 %v49
  %66 = vmatprep.subr.bf16.mxu0 0
  %67 = vmatpush1.bf16.msra.mxu0 0
  %68 = vmatprep.subr.bf16.mxu0 0
  %69 = vmatpush1.bf16.msra.mxu0 0
  %70 = vmatprep.subr.bf16.mxu0 0
  %71 = vmatpush1.bf16.msra.mxu0 0
  %72 = vmatprep.subr.bf16.mxu0 0
  %73 = vmatpush1.bf16.msra.mxu0 0
  %74 = vmatprep.subr.bf16.mxu0 0
  %75 = vmatpush1.bf16.msra.mxu0 0
  %76 = vmatprep.subr.bf16.mxu0 0
  %77 = vmatpush1.bf16.msra.mxu0 0
  %78 = vmatprep.subr.bf16.mxu0 0
  %79 = vmatpush1.bf16.msra.mxu0 0
  %80 = vmatprep.subr.bf16.mxu0 0
  %81 = vmatpush1.bf16.msra.mxu0 0
  %82 = vmatprep.mubr.bf16.mxu0 0
  %83 = vmatmul.mubr.bf16.gmra.mrb[0].mxu0 %v25
  %v84 = vpop.f32.mrb[0].mxu0
  %v85 = vadd.f32 0.0, %v84
  %v86 = vpop.f32.mrb[0].mxu0
  %v87 = vpop.f32.mrb[0].mxu0
  %v88 = vadd.f32 0.0, %v87
  %v89 = vpop.f32.mrb[0].mxu0
  %90 = vdwg.mxu0
  %v91 = vadd.f32 %v21, %v85
  %v92 = vadd.f32 %v22, %v88
  %93 = vst [vmem:[#allocation2] sm:$0xff] %v91
  %94 = vst [vmem:[#allocation2 + $0x8] sm:$0xff] %v92
  // Predicated region
  $region18: #{fwd.45} parent=0 // pred_check
    %p95 = pneg %p15
  $region19: #{fwd.45} parent=0 // pred_check_branch
    %97 = sbr.rel (%p95) target = $region21
  $region20: #{fwd.45} parent=0 // pred_region
    %v98 = vld [vmem:[#allocation2] sm:$0xff]
    %v99 = vld [vmem:[#allocation2 + $0x8] sm:$0xff]
    %v100 = vld [vmem:[%s2] sm:$0x1]
    %v102 = vlaneseq
    %v103 = vshrl.u32 %v102, 7
    %v104 = vsub.s32 0, %v103
    %v105 = vrot.slane %v100, %v104
    %v107 = vadd.f32 %v98, %v105
    %v108 = vadd.f32 %v99, %v105
    %v109 = vmax.f32 %v107, 0.0
    %v110 = vmax.f32 %v108, 0.0
    %111 = vst [vmem:[%s3] sm:$0xff] %v109
    %112 = vst [vmem:[%s3 + $0x8] sm:$0xff] %v110
  $region21: #{fwd.45} parent=0 // pred_fallthru
    _
  // Predicated region
  $region22: #{fwd.45} parent=0 // pred_check
    _
  $region23: #{fwd.45} parent=0 // pred_check_branch
    %114 = sbr.rel (0) target = $region25
  $region24: #{fwd.45} parent=0 // pred_region
    _
  $region25: #{fwd.45} parent=0 // pred_fallthru
    _
  // Predicated region
  $region26: #{fwd.45} parent=0 // pred_check
    _
  $region27: #{fwd.45} parent=0 // pred_check_branch
    %116 = sbr.rel (0) target = $region29
  $region28: #{fwd.45} parent=0 // pred_region
    _
  $region29: #{fwd.45} parent=0 // pred_fallthru
    _

// kernel: fwd.55
$region0: #{fwd.55}
  #allocation0 [shape = 'u32[]', space=smem, size = 0x4, offset = 0x4, fixed_abs, tag = 'smem constant byte address 0x4 - core index']
  #allocation1 [shape = 'u32[144,128]{1,0:T(1,128)}', space=vmem, size = 0x12000, scoped, tag = 'internal scratch']
  %s0 = inlined_call_operand.vmem [shape: f32[16,32], index: 0, kind: input, shape index: {}]
  %s1 = inlined_call_operand.vmem [shape: f32[1,32], index: 1, kind: input, shape index: {}]
  %s2 = inlined_call_operand.vmem [shape: f32[1,32], index: 2, kind: input, shape index: {}]
  %s3 = inlined_call_operand.vmem [shape: f32[16,32], index: 3, kind: output, shape index: {}]
  %s4 = sld [smem:[#allocation0]]
  $region22: #{fwd.55} parent=0
    _
  %s6 = ssub.s32 1, %s4
  %s7 = scalar_select 0, %s6, %s4
  // Predicated region
  $region2: #{fwd.55} parent=0 // pred_check
    _
  $region3: #{fwd.55} parent=0 // pred_check_branch
    %9 = sbr.rel (0) target = $region5
  $region4: #{fwd.55} parent=0 // pred_region
    _
  $region5: #{fwd.55} parent=0 // pred_fallthru
    _
  // Predicated region
  $region6: #{fwd.55} parent=0 // pred_check
    _
  $region7: #{fwd.55} parent=0 // pred_check_branch
    %11 = sbr.rel (0) target = $region9
  $region8: #{fwd.55} parent=0 // pred_region
    _
  $region9: #{fwd.55} parent=0 // pred_fallthru
    _
  // Predicated region
  $region10: #{fwd.55} parent=0 // pred_check
    _
  $region11: #{fwd.55} parent=0 // pred_check_branch
    %13 = sbr.rel (0) target = $region13
  $region12: #{fwd.55} parent=0 // pred_region
    _
  $region13: #{fwd.55} parent=0 // pred_fallthru
    _
  %v14 = vld [vmem:[%s0] sm:$0xff]
  %v15 = vld [vmem:[%s0 + $0x8] sm:$0xff]
  %vm16 = vcmask 261120
  %v17 = vsel %vm16, %v14, 0.0
  %18 = vadd.xlane.f32.xlu0 %v17
  %v19 = vpop.xlane.xlu0 %18
  %v20 = vsel %vm16, %v15, 0.0
  %21 = vadd.xlane.f32.xlu0 %v20
  %v22 = vpop.xlane.xlu0 %21
  %v23 = vrcp.pop 32.0
  %v24 = vmul.f32 %v19, %v23
  %v25 = vmul.f32 %v22, %v23
  %v26 = vsub.f32 %v14, %v24
  %v27 = vsub.f32 %v15, %v25
  %v28 = vmul.f32 %v26, %v26
  %v29 = vmul.f32 %v27, %v27
  %v30 = vsel %vm16, %v28, 0.0
  %31 = vadd.xlane.f32.xlu0 %v30
  %v32 = vpop.xlane.xlu0 %31
  %v33 = vsel %vm16, %v29, 0.0
  %34 = vadd.xlane.f32.xlu0 %v33
  %v35 = vpop.xlane.xlu0 %34
  %v36 = vmul.f32 %v32, %v23
  %v37 = vmul.f32 %v35, %v23
  %v38 = vadd.f32 %v36, 1e-05
  %v39 = vadd.f32 %v37, 1e-05
  %v40 = vrsqrt.pop %v38
  %v41 = vrsqrt.pop %v39
  %v42 = vmul.f32 %v26, %v40
  %v43 = vmul.f32 %v27, %v41
  %v44 = vld [vmem:[%s1] sm:$0x1]
  %v46 = vlaneseq
  %v47 = vshrl.u32 %v46, 7
  %v48 = vsub.s32 0, %v47
  %v49 = vrot.slane %v44, %v48
  %v51 = vmul.f32 %v42, %v49
  %v52 = vmul.f32 %v43, %v49
  %v53 = vld [vmem:[%s2] sm:$0x1]
  %v55 = vlaneseq
  %v56 = vshrl.u32 %v55, 7
  %v57 = vsub.s32 0, %v56
  %v58 = vrot.slane %v53, %v57
  %v60 = vadd.f32 %v51, %v58
  %v61 = vadd.f32 %v52, %v58
  %62 = vst.msk [vmem:[%s3] sm:$0xff] %vm16, %v60
  %63 = vst.msk [vmem:[%s3 + $0x8] sm:$0xff] %vm16, %v61
  // Predicated region
  $region14: #{fwd.55} parent=0 // pred_check
    _
  $region15: #{fwd.55} parent=0 // pred_check_branch
    %65 = sbr.rel (0) target = $region17
  $region16: #{fwd.55} parent=0 // pred_region
    _
  $region17: #{fwd.55} parent=0 // pred_fallthru
    _
  // Predicated region
  $region18: #{fwd.55} parent=0 // pred_check
    _
  $region19: #{fwd.55} parent=0 // pred_check_branch
    %67 = sbr.rel (0) target = $region21
  $region20: #{fwd.55} parent=0 // pred_region
    _
  $region21: #{fwd.55} parent=0 // pred_fallthru
    _

</llo_original>
